<compile_context>
chip_gen: v7x
topology: tpu7x:2x2x1
jax: 0.10.0
libtpu: 0.0.40
codegen_flags: <defaults>
</compile_context>

<pallas_src>
import numpy as np
import jax
import jax.numpy as jnp
from jax.experimental import pallas as pl
from jax.experimental.pallas import tpu as pltpu

LAMBDA_MSE = 1.0
LAMBDA_LAPLACIAN = 2.0
MAX_LEVELS = 3
_OUT_LANES = 128


def _avgpool_matrix(in_size):
    """1-D operator for avg_pool(kernel=2, stride=2) along one spatial axis."""
    out = in_size // 2
    M = np.zeros((out, in_size), dtype=np.float32)
    for i in range(out):
        M[i, 2 * i] = 0.5
        M[i, 2 * i + 1] = 0.5
    return M


def _bilinear_up_matrix(in_size, out_size):
    """1-D operator matching F.interpolate(mode='bilinear', align_corners=True)."""
    M = np.zeros((out_size, in_size), dtype=np.float32)
    scale = 0.0 if out_size == 1 else (in_size - 1) / (out_size - 1)
    for o in range(out_size):
        src = o * scale
        i0 = min(int(np.floor(src)), in_size - 1)
        i1 = min(i0 + 1, in_size - 1)
        w1 = np.float32(src - i0)
        M[o, i0] += np.float32(1.0) - w1
        M[o, i1] += w1
    return M


def _apply_sep_t(z, Mt):
    """Apply square separable operator M (passed TRANSPOSED: Mt = M^T, (p, r))
    along both spatial axes of z (b, p, p).  Returns (M @ z @ M^T)^T with shape
    (b, r, r) using a single per-image transpose (XLU) instead of two.

    Applying this twice (down, then up) yields the up-sample in the SAME
    orientation as the input:  ((U X^T U^T)^T = U X U^T  for X = D z D^T)."""
    b, p, q = z.shape
    r = Mt.shape[1]
    y = jnp.dot(z.reshape(b * p, q), Mt, preferred_element_type=jnp.float32)
    y = jnp.swapaxes(y.reshape(b, p, r), 1, 2)           # (b, r, p) = M @ z^T
    y = jnp.dot(y.reshape(b * r, p), Mt, preferred_element_type=jnp.float32)
    return y.reshape(b, r, r)                            # (M z M^T)^T


def _make_kernel(true_b, H, W, max_levels, lam_mse, lam_lap):
    # Mean-normalizers use the TRUE (unpadded) element counts; zero-padded batch
    # entries contribute 0 to every sum so padding is loss-neutral.
    c_mse = lam_mse / float(true_b * H * W)
    c_lvl = []
    h = H
    for _ in range(max_levels):
        c_lvl.append(lam_lap / float(true_b * h * h))
        h //= 2
    c_final = lam_lap / float(true_b * h * h)

    def kernel(x_ref, y_ref, *refs):
        op_refs, out_ref = refs[:-1], refs[-1]
        x = x_ref[...].astype(jnp.float32)
        y = y_ref[...].astype(jnp.float32)
        d = x - y

        contrib = c_mse * jnp.sum(d * d)                 # nn.MSELoss term

        cur = d                                          # (possibly transposed
        for lvl in range(max_levels):                    #  at odd levels; harmless
            Dt = op_refs[2 * lvl][...]                   #  for square images)
            Ut = op_refs[2 * lvl + 1][...]
            down_t = _apply_sep_t(cur, Dt)               # (D cur D^T)^T
            up = _apply_sep_t(down_t, Ut)                # U (D cur D^T) U^T  -- same
            resid = cur - up                             # orientation as cur
            contrib = contrib + c_lvl[lvl] * jnp.sum(resid * resid)
            cur = down_t
        contrib = contrib + c_final * jnp.sum(cur * cur)

        # Lane-dense (1,1,128) write: unmasked vst; host reads lane 0 only.
        out_ref[...] = jnp.broadcast_to(contrib, (1, 1, _OUT_LANES)).astype(jnp.float32)

    return kernel


def combined_laplacian_mse_loss(x, y, *, lambda_mse=LAMBDA_MSE,
                                lambda_laplacian=LAMBDA_LAPLACIAN,
                                max_levels=MAX_LEVELS, block_batch=None):
    """x, y: (N, C, H, W) float arrays (PyTorch NCHW). Returns scalar f32 loss."""
    N, C, H, W = x.shape
    assert H == W, "square spatial assumed (one 1-D operator set per level)"
    assert H % (2 ** max_levels) == 0
    B = N * C

    xb = x.reshape(B, H, W)
    yb = y.reshape(B, H, W)

    # Batch tile: keep each input block ~2 MiB so blocks + f32 temporaries +
    # double buffering stay well under the 32 MiB scoped-VMEM limit (v7x-safe).
    if block_batch is None:
        per_image_bytes = H * W * 4
        block_batch = max(1, (2 * 1024 * 1024) // per_image_bytes)
    tB = int(min(block_batch, B))

    # Zero-pad batch to a multiple of tB (padding contributes 0 to every sum).
    B_pad = ((B + tB - 1) // tB) * tB
    if B_pad != B:
        xb = jnp.pad(xb, ((0, B_pad - B), (0, 0), (0, 0)))
        yb = jnp.pad(yb, ((0, B_pad - B), (0, 0), (0, 0)))
    num_blocks = B_pad // tB

    # Pre-transposed separable operators (loaded once, resident across grid).
    mats = []
    h = H
    for _ in range(max_levels):
        mats.append(jnp.asarray(_avgpool_matrix(h).T))              # (h, h/2)
        mats.append(jnp.asarray(_bilinear_up_matrix(h // 2, h).T))  # (h/2, h)
        h //= 2

    kernel = _make_kernel(B, H, W, max_levels,
                          float(lambda_mse), float(lambda_laplacian))

    data_spec = pl.BlockSpec((tB, H, W), lambda b: (b, 0, 0))
    mat_specs = [pl.BlockSpec(m.shape, lambda b: (0, 0)) for m in mats]

    partials = pl.pallas_call(
        kernel,
        out_shape=jax.ShapeDtypeStruct((num_blocks, 1, _OUT_LANES), jnp.float32),
        grid_spec=pltpu.PrefetchScalarGridSpec(
            num_scalar_prefetch=0,
            grid=(num_blocks,),
            in_specs=[data_spec, data_spec] + mat_specs,
            out_specs=pl.BlockSpec((1, 1, _OUT_LANES), lambda b: (b, 0, 0)),
        ),
        compiler_params=pltpu.CompilerParams(
            dimension_semantics=("parallel",),
            vmem_limit_bytes=32 * 1024 * 1024,
        ),
    )(xb, yb, *mats)

    return jnp.sum(partials[:, 0, 0])


def _reference_loss(x, y, *, lambda_mse=LAMBDA_MSE,
                    lambda_laplacian=LAMBDA_LAPLACIAN, max_levels=MAX_LEVELS):
    """Pure-JAX reference (direct pooling, identical upsample semantics)."""
    N, C, H, W = x.shape
    d = (x - y).reshape(N * C, H, W).astype(jnp.float32)
    mse = jnp.mean(d * d)
    lap = jnp.float32(0.0)
    cur = d
    for _ in range(max_levels):
        B, hh, ww = cur.shape
        down = cur.reshape(B, hh // 2, 2, ww // 2, 2).mean(axis=(2, 4))
        U = jnp.asarray(_bilinear_up_matrix(hh // 2, hh))
        up = jnp.einsum('oi,bij,pj->bop', U, down, U)
        lap = lap + jnp.mean((cur - up) ** 2)
        cur = down
    lap = lap + jnp.mean(cur * cur)
    return lambda_mse * mse + lambda_laplacian * lap


if __name__ == "__main__":
    key = jax.random.PRNGKey(0)
    k1, k2 = jax.random.split(key)

    # Config 1: B = N*C = 8, tile 4 -> 2-step parallel grid, no padding.
    N, C, H, W = 2, 4, 16, 16
    x = jax.random.normal(k1, (N, C, H, W), dtype=jnp.float32)
    y = jax.random.normal(k2, (N, C, H, W), dtype=jnp.float32)

    fn = jax.jit(lambda a, b: combined_laplacian_mse_loss(a, b, block_batch=4))
    loss = jax.block_until_ready(fn(x, y))
    ref = jax.block_until_ready(_reference_loss(x, y))
    assert np.isfinite(float(loss))
    np.testing.assert_allclose(float(loss), float(ref), rtol=1e-5, atol=1e-5)

    # Config 2: B = 6 with tile 4 -> exercises the zero-padded last block.
    N2, C2 = 2, 3
    x2 = jax.random.normal(k1, (N2, C2, H, W), dtype=jnp.float32)
    y2 = jax.random.normal(k2, (N2, C2, H, W), dtype=jnp.float32)
    loss2 = jax.block_until_ready(
        combined_laplacian_mse_loss(x2, y2, block_batch=4))
    ref2 = jax.block_until_ready(_reference_loss(x2, y2))
    np.testing.assert_allclose(float(loss2), float(ref2), rtol=1e-5, atol=1e-5)

    print("KERNEL_OK")
</pallas_src>

<mosaic_0001>
module attributes {stable_mosaic.version = 11 : i64} {
  func.func @kernel(%arg0: i32, %arg1: memref<4x16x16xf32, #tpu.memory_space<vmem>>, %arg2: memref<4x16x16xf32, #tpu.memory_space<vmem>>, %arg3: memref<16x8xf32, #tpu.memory_space<vmem>>, %arg4: memref<8x16xf32, #tpu.memory_space<vmem>>, %arg5: memref<8x4xf32, #tpu.memory_space<vmem>>, %arg6: memref<4x8xf32, #tpu.memory_space<vmem>>, %arg7: memref<4x2xf32, #tpu.memory_space<vmem>>, %arg8: memref<2x4xf32, #tpu.memory_space<vmem>>, %arg9: memref<1x1x128xf32, #tpu.memory_space<vmem>>) attributes {dimension_semantics = [#tpu.dimension_semantics<parallel>], iteration_bounds = array<i64: 2>, scalar_prefetch = 0 : i64, scratch_operands = 0 : i64, tpu.core_type = #tpu.core_type<tc>, window_params = [{transform_indices = @transform_0, window_bounds = array<i64: 4, 16, 16>}, {transform_indices = @transform_1, window_bounds = array<i64: 4, 16, 16>}, {pipeline_mode = #tpu.pipeline_mode<synchronous>, transform_indices = @transform_2, window_bounds = array<i64: 16, 8>}, {pipeline_mode = #tpu.pipeline_mode<synchronous>, transform_indices = @transform_3, window_bounds = array<i64: 8, 16>}, {pipeline_mode = #tpu.pipeline_mode<synchronous>, transform_indices = @transform_4, window_bounds = array<i64: 8, 4>}, {pipeline_mode = #tpu.pipeline_mode<synchronous>, transform_indices = @transform_5, window_bounds = array<i64: 4, 8>}, {pipeline_mode = #tpu.pipeline_mode<synchronous>, transform_indices = @transform_6, window_bounds = array<i64: 4, 2>}, {pipeline_mode = #tpu.pipeline_mode<synchronous>, transform_indices = @transform_7, window_bounds = array<i64: 2, 4>}, {transform_indices = @transform_8, window_bounds = array<i64: 1, 1, 128>}]} {
    %c0 = arith.constant 0 : index
    %c0_0 = arith.constant 0 : index
    %c0_1 = arith.constant 0 : index
    %0 = vector.load %arg1[%c0, %c0_0, %c0_1] : memref<4x16x16xf32, #tpu.memory_space<vmem>>, vector<4x16x16xf32>
    %c0_2 = arith.constant 0 : index
    %c0_3 = arith.constant 0 : index
    %c0_4 = arith.constant 0 : index
    %1 = vector.load %arg2[%c0_2, %c0_3, %c0_4] : memref<4x16x16xf32, #tpu.memory_space<vmem>>, vector<4x16x16xf32>
    %2 = arith.subf %0, %1 : vector<4x16x16xf32>
    %3 = arith.mulf %2, %2 : vector<4x16x16xf32>
    %4 = vector.shape_cast %3 : vector<4x16x16xf32> to vector<1x4x16x16xf32>
    %cst = arith.constant dense<0.000000e+00> : vector<1xf32>
    %5 = vector.multi_reduction <add>, %4, %cst [1, 2, 3] : vector<1x4x16x16xf32> to vector<1xf32>
    %6 = vector.shape_cast %5 : vector<1xf32> to vector<1x1x1x1xf32>
    %7 = vector.extract %6[0, 0, 0, 0] : f32 from vector<1x1x1x1xf32>
    %cst_5 = arith.constant 4.8828125E-4 : f32
    %8 = arith.mulf %cst_5, %7 : f32
    %c0_6 = arith.constant 0 : index
    %c0_7 = arith.constant 0 : index
    %9 = vector.load %arg3[%c0_6, %c0_7] : memref<16x8xf32, #tpu.memory_space<vmem>>, vector<16x8xf32>
    %c0_8 = arith.constant 0 : index
    %c0_9 = arith.constant 0 : index
    %10 = vector.load %arg4[%c0_8, %c0_9] : memref<8x16xf32, #tpu.memory_space<vmem>>, vector<8x16xf32>
    %11 = vector.shape_cast %2 : vector<4x16x16xf32> to vector<64x16xf32>
    %cst_10 = arith.constant dense<0.000000e+00> : vector<64x8xf32>
    %12 = tpu.matmul %11, %9, %cst_10 {dimension_numbers = #tpu.dot_dimension_numbers<[1], [0], [0], [1], [0, 0, 1, 1], [], []>} : vector<64x16xf32>, vector<16x8xf32>, vector<64x8xf32> -> vector<64x8xf32>
    %13 = vector.shape_cast %12 : vector<64x8xf32> to vector<4x16x8xf32>
    %14 = tpu.transpose %13, [0, 2, 1] : vector<4x16x8xf32> -> vector<4x8x16xf32>
    %15 = vector.shape_cast %14 : vector<4x8x16xf32> to vector<32x16xf32>
    %cst_11 = arith.constant dense<0.000000e+00> : vector<32x8xf32>
    %16 = tpu.matmul %15, %9, %cst_11 {dimension_numbers = #tpu.dot_dimension_numbers<[1], [0], [0], [1], [0, 0, 1, 1], [], []>} : vector<32x16xf32>, vector<16x8xf32>, vector<32x8xf32> -> vector<32x8xf32>
    %17 = vector.shape_cast %16 : vector<32x8xf32> to vector<4x8x8xf32>
    %18 = vector.shape_cast %17 : vector<4x8x8xf32> to vector<32x8xf32>
    %cst_12 = arith.constant dense<0.000000e+00> : vector<32x16xf32>
    %19 = tpu.matmul %18, %10, %cst_12 {dimension_numbers = #tpu.dot_dimension_numbers<[1], [0], [0], [1], [0, 0, 1, 1], [], []>} : vector<32x8xf32>, vector<8x16xf32>, vector<32x16xf32> -> vector<32x16xf32>
    %20 = vector.shape_cast %19 : vector<32x16xf32> to vector<4x8x16xf32>
    %21 = tpu.transpose %20, [0, 2, 1] : vector<4x8x16xf32> -> vector<4x16x8xf32>
    %22 = vector.shape_cast %21 : vector<4x16x8xf32> to vector<64x8xf32>
    %cst_13 = arith.constant dense<0.000000e+00> : vector<64x16xf32>
    %23 = tpu.matmul %22, %10, %cst_13 {dimension_numbers = #tpu.dot_dimension_numbers<[1], [0], [0], [1], [0, 0, 1, 1], [], []>} : vector<64x8xf32>, vector<8x16xf32>, vector<64x16xf32> -> vector<64x16xf32>
    %24 = vector.shape_cast %23 : vector<64x16xf32> to vector<4x16x16xf32>
    %25 = arith.subf %2, %24 : vector<4x16x16xf32>
    %26 = arith.mulf %25, %25 : vector<4x16x16xf32>
    %27 = vector.shape_cast %26 : vector<4x16x16xf32> to vector<1x4x16x16xf32>
    %cst_14 = arith.constant dense<0.000000e+00> : vector<1xf32>
    %28 = vector.multi_reduction <add>, %27, %cst_14 [1, 2, 3] : vector<1x4x16x16xf32> to vector<1xf32>
    %29 = vector.shape_cast %28 : vector<1xf32> to vector<1x1x1x1xf32>
    %30 = vector.extract %29[0, 0, 0, 0] : f32 from vector<1x1x1x1xf32>
    %cst_15 = arith.constant 9.765625E-4 : f32
    %31 = arith.mulf %cst_15, %30 : f32
    %32 = arith.addf %8, %31 : f32
    %c0_16 = arith.constant 0 : index
    %c0_17 = arith.constant 0 : index
    %33 = vector.load %arg5[%c0_16, %c0_17] : memref<8x4xf32, #tpu.memory_space<vmem>>, vector<8x4xf32>
    %c0_18 = arith.constant 0 : index
    %c0_19 = arith.constant 0 : index
    %34 = vector.load %arg6[%c0_18, %c0_19] : memref<4x8xf32, #tpu.memory_space<vmem>>, vector<4x8xf32>
    %35 = vector.shape_cast %17 : vector<4x8x8xf32> to vector<32x8xf32>
    %cst_20 = arith.constant dense<0.000000e+00> : vector<32x4xf32>
    %36 = tpu.matmul %35, %33, %cst_20 {dimension_numbers = #tpu.dot_dimension_numbers<[1], [0], [0], [1], [0, 0, 1, 1], [], []>} : vector<32x8xf32>, vector<8x4xf32>, vector<32x4xf32> -> vector<32x4xf32>
    %37 = vector.shape_cast %36 : vector<32x4xf32> to vector<4x8x4xf32>
    %38 = tpu.transpose %37, [0, 2, 1] : vector<4x8x4xf32> -> vector<4x4x8xf32>
    %39 = vector.shape_cast %38 : vector<4x4x8xf32> to vector<16x8xf32>
    %cst_21 = arith.constant dense<0.000000e+00> : vector<16x4xf32>
    %40 = tpu.matmul %39, %33, %cst_21 {dimension_numbers = #tpu.dot_dimension_numbers<[1], [0], [0], [1], [0, 0, 1, 1], [], []>} : vector<16x8xf32>, vector<8x4xf32>, vector<16x4xf32> -> vector<16x4xf32>
    %41 = vector.shape_cast %40 : vector<16x4xf32> to vector<4x4x4xf32>
    %42 = vector.shape_cast %41 : vector<4x4x4xf32> to vector<16x4xf32>
    %cst_22 = arith.constant dense<0.000000e+00> : vector<16x8xf32>
    %43 = tpu.matmul %42, %34, %cst_22 {dimension_numbers = #tpu.dot_dimension_numbers<[1], [0], [0], [1], [0, 0, 1, 1], [], []>} : vector<16x4xf32>, vector<4x8xf32>, vector<16x8xf32> -> vector<16x8xf32>
    %44 = vector.shape_cast %43 : vector<16x8xf32> to vector<4x4x8xf32>
    %45 = tpu.transpose %44, [0, 2, 1] : vector<4x4x8xf32> -> vector<4x8x4xf32>
    %46 = vector.shape_cast %45 : vector<4x8x4xf32> to vector<32x4xf32>
    %cst_23 = arith.constant dense<0.000000e+00> : vector<32x8xf32>
    %47 = tpu.matmul %46, %34, %cst_23 {dimension_numbers = #tpu.dot_dimension_numbers<[1], [0], [0], [1], [0, 0, 1, 1], [], []>} : vector<32x4xf32>, vector<4x8xf32>, vector<32x8xf32> -> vector<32x8xf32>
    %48 = vector.shape_cast %47 : vector<32x8xf32> to vector<4x8x8xf32>
    %49 = arith.subf %17, %48 : vector<4x8x8xf32>
    %50 = arith.mulf %49, %49 : vector<4x8x8xf32>
    %51 = vector.shape_cast %50 : vector<4x8x8xf32> to vector<1x4x8x8xf32>
    %cst_24 = arith.constant dense<0.000000e+00> : vector<1xf32>
    %52 = vector.multi_reduction <add>, %51, %cst_24 [1, 2, 3] : vector<1x4x8x8xf32> to vector<1xf32>
    %53 = vector.shape_cast %52 : vector<1xf32> to vector<1x1x1x1xf32>
    %54 = vector.extract %53[0, 0, 0, 0] : f32 from vector<1x1x1x1xf32>
    %cst_25 = arith.constant 3.906250e-03 : f32
    %55 = arith.mulf %cst_25, %54 : f32
    %56 = arith.addf %32, %55 : f32
    %c0_26 = arith.constant 0 : index
    %c0_27 = arith.constant 0 : index
    %57 = vector.load %arg7[%c0_26, %c0_27] : memref<4x2xf32, #tpu.memory_space<vmem>>, vector<4x2xf32>
    %c0_28 = arith.constant 0 : index
    %c0_29 = arith.constant 0 : index
    %58 = vector.load %arg8[%c0_28, %c0_29] : memref<2x4xf32, #tpu.memory_space<vmem>>, vector<2x4xf32>
    %59 = vector.shape_cast %41 : vector<4x4x4xf32> to vector<16x4xf32>
    %cst_30 = arith.constant dense<0.000000e+00> : vector<16x2xf32>
    %60 = tpu.matmul %59, %57, %cst_30 {dimension_numbers = #tpu.dot_dimension_numbers<[1], [0], [0], [1], [0, 0, 1, 1], [], []>} : vector<16x4xf32>, vector<4x2xf32>, vector<16x2xf32> -> vector<16x2xf32>
    %61 = vector.shape_cast %60 : vector<16x2xf32> to vector<4x4x2xf32>
    %62 = tpu.transpose %61, [0, 2, 1] : vector<4x4x2xf32> -> vector<4x2x4xf32>
    %63 = vector.shape_cast %62 : vector<4x2x4xf32> to vector<8x4xf32>
    %cst_31 = arith.constant dense<0.000000e+00> : vector<8x2xf32>
    %64 = tpu.matmul %63, %57, %cst_31 {dimension_numbers = #tpu.dot_dimension_numbers<[1], [0], [0], [1], [0, 0, 1, 1], [], []>} : vector<8x4xf32>, vector<4x2xf32>, vector<8x2xf32> -> vector<8x2xf32>
    %65 = vector.shape_cast %64 : vector<8x2xf32> to vector<4x2x2xf32>
    %66 = vector.shape_cast %65 : vector<4x2x2xf32> to vector<8x2xf32>
    %cst_32 = arith.constant dense<0.000000e+00> : vector<8x4xf32>
    %67 = tpu.matmul %66, %58, %cst_32 {dimension_numbers = #tpu.dot_dimension_numbers<[1], [0], [0], [1], [0, 0, 1, 1], [], []>} : vector<8x2xf32>, vector<2x4xf32>, vector<8x4xf32> -> vector<8x4xf32>
    %68 = vector.shape_cast %67 : vector<8x4xf32> to vector<4x2x4xf32>
    %69 = tpu.transpose %68, [0, 2, 1] : vector<4x2x4xf32> -> vector<4x4x2xf32>
    %70 = vector.shape_cast %69 : vector<4x4x2xf32> to vector<16x2xf32>
    %cst_33 = arith.constant dense<0.000000e+00> : vector<16x4xf32>
    %71 = tpu.matmul %70, %58, %cst_33 {dimension_numbers = #tpu.dot_dimension_numbers<[1], [0], [0], [1], [0, 0, 1, 1], [], []>} : vector<16x2xf32>, vector<2x4xf32>, vector<16x4xf32> -> vector<16x4xf32>
    %72 = vector.shape_cast %71 : vector<16x4xf32> to vector<4x4x4xf32>
    %73 = arith.subf %41, %72 : vector<4x4x4xf32>
    %74 = arith.mulf %73, %73 : vector<4x4x4xf32>
    %75 = vector.shape_cast %74 : vector<4x4x4xf32> to vector<1x4x4x4xf32>
    %cst_34 = arith.constant dense<0.000000e+00> : vector<1xf32>
    %76 = vector.multi_reduction <add>, %75, %cst_34 [1, 2, 3] : vector<1x4x4x4xf32> to vector<1xf32>
    %77 = vector.shape_cast %76 : vector<1xf32> to vector<1x1x1x1xf32>
    %78 = vector.extract %77[0, 0, 0, 0] : f32 from vector<1x1x1x1xf32>
    %cst_35 = arith.constant 1.562500e-02 : f32
    %79 = arith.mulf %cst_35, %78 : f32
    %80 = arith.addf %56, %79 : f32
    %81 = arith.mulf %65, %65 : vector<4x2x2xf32>
    %82 = vector.shape_cast %81 : vector<4x2x2xf32> to vector<1x4x2x2xf32>
    %cst_36 = arith.constant dense<0.000000e+00> : vector<1xf32>
    %83 = vector.multi_reduction <add>, %82, %cst_36 [1, 2, 3] : vector<1x4x2x2xf32> to vector<1xf32>
    %84 = vector.shape_cast %83 : vector<1xf32> to vector<1x1x1x1xf32>
    %85 = vector.extract %84[0, 0, 0, 0] : f32 from vector<1x1x1x1xf32>
    %cst_37 = arith.constant 6.250000e-02 : f32
    %86 = arith.mulf %cst_37, %85 : f32
    %87 = arith.addf %80, %86 : f32
    %88 = vector.broadcast %87 : f32 to vector<1x1x128xf32>
    %c0_38 = arith.constant 0 : index
    %c0_39 = arith.constant 0 : index
    %c0_40 = arith.constant 0 : index
    %89 = vector.load %arg9[%c0_38, %c0_39, %c0_40] : memref<1x1x128xf32, #tpu.memory_space<vmem>>, vector<1x1x128xf32>
    tpu.vector_store %arg9[%c0_38, %c0_39, %c0_40], %88 {strides = array<i32>} : memref<1x1x128xf32, #tpu.memory_space<vmem>>, vector<1x1x128xf32>,
    return
  }
  func.func @transform_0(%arg0: i32) -> (i32, i32, i32) {
    %c0_i32 = arith.constant 0 : i32
    %c0_i32_0 = arith.constant 0 : i32
    %c0_i32_1 = arith.constant 0 : i32
    return %arg0, %c0_i32, %c0_i32_0 : i32, i32, i32
  }
  func.func @transform_1(%arg0: i32) -> (i32, i32, i32) {
    %c0_i32 = arith.constant 0 : i32
    %c0_i32_0 = arith.constant 0 : i32
    %c0_i32_1 = arith.constant 0 : i32
    return %arg0, %c0_i32, %c0_i32_0 : i32, i32, i32
  }
  func.func @transform_2(%arg0: i32) -> (i32, i32) {
    %c0_i32 = arith.constant 0 : i32
    %c0_i32_0 = arith.constant 0 : i32
    %c0_i32_1 = arith.constant 0 : i32
    return %c0_i32, %c0_i32_0 : i32, i32
  }
  func.func @transform_3(%arg0: i32) -> (i32, i32) {
    %c0_i32 = arith.constant 0 : i32
    %c0_i32_0 = arith.constant 0 : i32
    %c0_i32_1 = arith.constant 0 : i32
    return %c0_i32, %c0_i32_0 : i32, i32
  }
  func.func @transform_4(%arg0: i32) -> (i32, i32) {
    %c0_i32 = arith.constant 0 : i32
    %c0_i32_0 = arith.constant 0 : i32
    %c0_i32_1 = arith.constant 0 : i32
    return %c0_i32, %c0_i32_0 : i32, i32
  }
  func.func @transform_5(%arg0: i32) -> (i32, i32) {
    %c0_i32 = arith.constant 0 : i32
    %c0_i32_0 = arith.constant 0 : i32
    %c0_i32_1 = arith.constant 0 : i32
    return %c0_i32, %c0_i32_0 : i32, i32
  }
  func.func @transform_6(%arg0: i32) -> (i32, i32) {
    %c0_i32 = arith.constant 0 : i32
    %c0_i32_0 = arith.constant 0 : i32
    %c0_i32_1 = arith.constant 0 : i32
    return %c0_i32, %c0_i32_0 : i32, i32
  }
  func.func @transform_7(%arg0: i32) -> (i32, i32) {
    %c0_i32 = arith.constant 0 : i32
    %c0_i32_0 = arith.constant 0 : i32
    %c0_i32_1 = arith.constant 0 : i32
    return %c0_i32, %c0_i32_0 : i32, i32
  }
  func.func @transform_8(%arg0: i32) -> (i32, i32, i32) {
    %c0_i32 = arith.constant 0 : i32
    %c0_i32_0 = arith.constant 0 : i32
    %c0_i32_1 = arith.constant 0 : i32
    return %arg0, %c0_i32, %c0_i32_0 : i32, i32, i32
  }
}

</mosaic_0001>

<llo_original>
// kernel: _lambda_.1
$region0: #{_lambda_.1}
  #allocation0 [shape = 'u32[]', space=smem, size = 0x4, offset = 0x4, fixed_abs, tag = 'smem constant byte address 0x4 - core index']
  #allocation1 [shape = 'u32[144,128]{1,0:T(1,128)}', space=vmem, size = 0x12000, scoped, tag = 'internal scratch']
  %s0 = inlined_call_operand.hbm [shape: f32[8,16,16], index: 0, kind: input, shape index: {}]
  %s1 = inlined_call_operand.hbm [shape: f32[8,16,16], index: 1, kind: input, shape index: {}]
  %s2 = inlined_call_operand.hbm [shape: f32[16,8], index: 2, kind: input, shape index: {}]
  %s3 = inlined_call_operand.vmem [shape: f32[8,16], index: 3, kind: input, shape index: {}]
  %s4 = inlined_call_operand.vmem [shape: f32[8,4], index: 4, kind: input, shape index: {}]
  %s5 = inlined_call_operand.vmem [shape: f32[4,8], index: 5, kind: input, shape index: {}]
  %s6 = inlined_call_operand.vmem [shape: f32[4,2], index: 6, kind: input, shape index: {}]
  %s7 = inlined_call_operand.vmem [shape: f32[2,4], index: 7, kind: input, shape index: {}]
  %s8 = inlined_call_operand.vmem [shape: f32[2,1,128], index: 8, kind: output, shape index: {}]
  %s9 = sld [smem:[#allocation0]]
  $region77: #{_lambda_.1} parent=0
    _
  %s11 = ssub.s32 1, %s9
  %s12 = scalar_select 0, %s11, %s9
  $region1: #{_lambda_.1} parent=0
    #allocation2 [shape = 'u8[65536]{0}', space=vmem, size = 0x10000, scoped, tag = 'input window, operand 0']
    #allocation3 [shape = 's32[2]{0}', space=sflag, size = 0x8, scoped, tag = 'scoped memory for _lambda_.1']
    #allocation4 [shape = 'u8[65536]{0}', space=vmem, size = 0x10000, scoped, tag = 'input window, operand 1']
    #allocation5 [shape = 's32[2]{0}', space=sflag, size = 0x8, scoped, tag = 'scoped memory for _lambda_.1']
    #allocation6 [shape = 'u8[8192]{0}', space=vmem, size = 0x2000, scoped, tag = 'input window, operand 2, single buffered']
    %13 = vsyncpa [#allocation3], 0
    %s14 = scalar_lea.sflag [#allocation3], 1
    %15 = vsyncpa %s14, 0
    %16 = vsyncpa [#allocation5], 0
    %s17 = scalar_lea.sflag [#allocation5], 1
    %18 = vsyncpa %s17, 0
    loop: start=0, step=1, limit=4
    $region2: #{_lambda_.1} parent=1 // loop_pre_header
      _
    $region3: #{_lambda_.1} parent=1 // loop_header
      %s20 = sphi 0, %s24
      %p21 = scmp.ge.s32.totalorder %s20, 4
      %s30 = sphi 0, %s32
      %s33 = sphi 0, %s30
      %s34 = sphi 0, %s33
      %s50 = sphi 0, %s34
      %s56 = sphi 0, %s58
      %s59 = sphi 0, %s56
      %s60 = sphi 0, %s59
      %s76 = sphi 0, %s60
      %s80 = sphi 0, %s80
      %s82 = sphi 0, %s80
      %s83 = sphi 0, %s82
      %s97 = sphi 0, %s83
      %s101 = sphi 0, %s101
      %s103 = sphi 0, %s101
      %s104 = sphi 0, %s103
      %s118 = sphi 0, %s104
      %s122 = sphi 0, %s122
      %s124 = sphi 0, %s122
      %s125 = sphi 0, %s124
      %s139 = sphi 0, %s125
      %s143 = sphi 0, %s143
      %s145 = sphi 0, %s143
      %s146 = sphi 0, %s145
      %s160 = sphi 0, %s146
      %s164 = sphi 0, %s164
      %s166 = sphi 0, %s164
      %s167 = sphi 0, %s166
      %s181 = sphi 0, %s167
      %s185 = sphi 0, %s185
      %s187 = sphi 0, %s185
      %s188 = sphi 0, %s187
      %s202 = sphi 0, %s188
      %s208 = sphi 0, %s210
      %s211 = sphi 0, %s208
      %s212 = sphi 0, %s211
      %s228 = sphi 0, %s212
    $region4: #{_lambda_.1} parent=1 // loop_header_branch
      %23 = sbr.rel (%p21) target = $region8
    $region5: #{_lambda_.1} parent=1 // loop_body
      %s25 = ssub.s32 %s20, 1
      %s26 = ssub.s32 %s20, 2
      %s27 = sadd.s32 %s20, 1
      %s28 = ssub.s32 %s20, %s27
      %p29 = scmp.eq.s32.totalorder %s28, 0
      %s31 = sadd.s32 %s30, 1
      %s32 = scalar_select %p29, %s30, %s31
      %p35 = pneg %p29
      %p36 = scmp.eq.s32.totalorder %s20, 1
      %p37 = por %p35, %p36
      %p38 = scmp.ne.s32.totalorder %s30, %s33
      %p39 = scmp.eq.s32.totalorder %s20, 0
      %p40 = por %p38, %p39
      %p41 = scmp.ne.s32.totalorder %s30, %s33
      %p42 = scmp.eq.s32.totalorder %s25, 1
      %p43 = por %p41, %p42
      %p44 = scmp.ne.s32.totalorder %s33, %s34
      %p45 = scmp.eq.s32.totalorder %s25, 0
      %p46 = por %p44, %p45
      %p47 = scmp.ne.s32.totalorder %s33, %s34
      %p48 = scmp.eq.s32.totalorder %s26, 1
      %p49 = por %p47, %p48
      %p51 = scmp.ne.s32.totalorder %s34, %s50
      %p52 = scmp.eq.s32.totalorder %s26, 0
      %p53 = por %p51, %p52
      %s54 = ssub.s32 %s20, %s27
      %p55 = scmp.eq.s32.totalorder %s54, 0
      %s57 = sadd.s32 %s56, 1
      %s58 = scalar_select %p55, %s56, %s57
      %p61 = pneg %p55
      %p62 = scmp.eq.s32.totalorder %s20, 1
      %p63 = por %p61, %p62
      %p64 = scmp.ne.s32.totalorder %s56, %s59
      %p65 = scmp.eq.s32.totalorder %s20, 0
      %p66 = por %p64, %p65
      %p67 = scmp.ne.s32.totalorder %s56, %s59
      %p68 = scmp.eq.s32.totalorder %s25, 1
      %p69 = por %p67, %p68
      %p70 = scmp.ne.s32.totalorder %s59, %s60
      %p71 = scmp.eq.s32.totalorder %s25, 0
      %p72 = por %p70, %p71
      %p73 = scmp.ne.s32.totalorder %s59, %s60
      %p74 = scmp.eq.s32.totalorder %s26, 1
      %p75 = por %p73, %p74
      %p77 = scmp.ne.s32.totalorder %s60, %s76
      %p78 = scmp.eq.s32.totalorder %s26, 0
      %p79 = por %p77, %p78
      %s81 = sadd.s32 %s80, 1
      %p84 = scmp.eq.s32.totalorder %s20, 1
      %p85 = scmp.ne.s32.totalorder %s80, %s82
      %p86 = scmp.eq.s32.totalorder %s20, 0
      %p87 = por %p85, %p86
      %p88 = scmp.ne.s32.totalorder %s80, %s82
      %p89 = scmp.eq.s32.totalorder %s25, 1
      %p90 = por %p88, %p89
      %p91 = scmp.ne.s32.totalorder %s82, %s83
      %p92 = scmp.eq.s32.totalorder %s25, 0
      %p93 = por %p91, %p92
      %p94 = scmp.ne.s32.totalorder %s82, %s83
      %p95 = scmp.eq.s32.totalorder %s26, 1
      %p96 = por %p94, %p95
      %p98 = scmp.ne.s32.totalorder %s83, %s97
      %p99 = scmp.eq.s32.totalorder %s26, 0
      %p100 = por %p98, %p99
      %s102 = sadd.s32 %s101, 1
      %p105 = scmp.eq.s32.totalorder %s20, 1
      %p106 = scmp.ne.s32.totalorder %s101, %s103
      %p107 = scmp.eq.s32.totalorder %s20, 0
      %p108 = por %p106, %p107
      %p109 = scmp.ne.s32.totalorder %s101, %s103
      %p110 = scmp.eq.s32.totalorder %s25, 1
      %p111 = por %p109, %p110
      %p112 = scmp.ne.s32.totalorder %s103, %s104
      %p113 = scmp.eq.s32.totalorder %s25, 0
      %p114 = por %p112, %p113
      %p115 = scmp.ne.s32.totalorder %s103, %s104
      %p116 = scmp.eq.s32.totalorder %s26, 1
      %p117 = por %p115, %p116
      %p119 = scmp.ne.s32.totalorder %s104, %s118
      %p120 = scmp.eq.s32.totalorder %s26, 0
      %p121 = por %p119, %p120
      %s123 = sadd.s32 %s122, 1
      %p126 = scmp.eq.s32.totalorder %s20, 1
      %p127 = scmp.ne.s32.totalorder %s122, %s124
      %p128 = scmp.eq.s32.totalorder %s20, 0
      %p129 = por %p127, %p128
      %p130 = scmp.ne.s32.totalorder %s122, %s124
      %p131 = scmp.eq.s32.totalorder %s25, 1
      %p132 = por %p130, %p131
      %p133 = scmp.ne.s32.totalorder %s124, %s125
      %p134 = scmp.eq.s32.totalorder %s25, 0
      %p135 = por %p133, %p134
      %p136 = scmp.ne.s32.totalorder %s124, %s125
      %p137 = scmp.eq.s32.totalorder %s26, 1
      %p138 = por %p136, %p137
      %p140 = scmp.ne.s32.totalorder %s125, %s139
      %p141 = scmp.eq.s32.totalorder %s26, 0
      %p142 = por %p140, %p141
      %s144 = sadd.s32 %s143, 1
      %p147 = scmp.eq.s32.totalorder %s20, 1
      %p148 = scmp.ne.s32.totalorder %s143, %s145
      %p149 = scmp.eq.s32.totalorder %s20, 0
      %p150 = por %p148, %p149
      %p151 = scmp.ne.s32.totalorder %s143, %s145
      %p152 = scmp.eq.s32.totalorder %s25, 1
      %p153 = por %p151, %p152
      %p154 = scmp.ne.s32.totalorder %s145, %s146
      %p155 = scmp.eq.s32.totalorder %s25, 0
      %p156 = por %p154, %p155
      %p157 = scmp.ne.s32.totalorder %s145, %s146
      %p158 = scmp.eq.s32.totalorder %s26, 1
      %p159 = por %p157, %p158
      %p161 = scmp.ne.s32.totalorder %s146, %s160
      %p162 = scmp.eq.s32.totalorder %s26, 0
      %p163 = por %p161, %p162
      %s165 = sadd.s32 %s164, 1
      %p168 = scmp.eq.s32.totalorder %s20, 1
      %p169 = scmp.ne.s32.totalorder %s164, %s166
      %p170 = scmp.eq.s32.totalorder %s20, 0
      %p171 = por %p169, %p170
      %p172 = scmp.ne.s32.totalorder %s164, %s166
      %p173 = scmp.eq.s32.totalorder %s25, 1
      %p174 = por %p172, %p173
      %p175 = scmp.ne.s32.totalorder %s166, %s167
      %p176 = scmp.eq.s32.totalorder %s25, 0
      %p177 = por %p175, %p176
      %p178 = scmp.ne.s32.totalorder %s166, %s167
      %p179 = scmp.eq.s32.totalorder %s26, 1
      %p180 = por %p178, %p179
      %p182 = scmp.ne.s32.totalorder %s167, %s181
      %p183 = scmp.eq.s32.totalorder %s26, 0
      %p184 = por %p182, %p183
      %s186 = sadd.s32 %s185, 1
      %p189 = scmp.eq.s32.totalorder %s20, 1
      %p190 = scmp.ne.s32.totalorder %s185, %s187
      %p191 = scmp.eq.s32.totalorder %s20, 0
      %p192 = por %p190, %p191
      %p193 = scmp.ne.s32.totalorder %s185, %s187
      %p194 = scmp.eq.s32.totalorder %s25, 1
      %p195 = por %p193, %p194
      %p196 = scmp.ne.s32.totalorder %s187, %s188
      %p197 = scmp.eq.s32.totalorder %s25, 0
      %p198 = por %p196, %p197
      %p199 = scmp.ne.s32.totalorder %s187, %s188
      %p200 = scmp.eq.s32.totalorder %s26, 1
      %p201 = por %p199, %p200
      %p203 = scmp.ne.s32.totalorder %s188, %s202
      %p204 = scmp.eq.s32.totalorder %s26, 0
      %p205 = por %p203, %p204
      %s206 = ssub.s32 %s20, %s27
      %p207 = scmp.eq.s32.totalorder %s206, 0
      %s209 = sadd.s32 %s208, 1
      %s210 = scalar_select %p207, %s208, %s209
      %p213 = pneg %p207
      %p214 = scmp.eq.s32.totalorder %s20, 1
      %p215 = por %p213, %p214
      %p216 = scmp.ne.s32.totalorder %s208, %s211
      %p217 = scmp.eq.s32.totalorder %s20, 0
      %p218 = por %p216, %p217
      %p219 = scmp.ne.s32.totalorder %s208, %s211
      %p220 = scmp.eq.s32.totalorder %s25, 1
      %p221 = por %p219, %p220
      %p222 = scmp.ne.s32.totalorder %s211, %s212
      %p223 = scmp.eq.s32.totalorder %s25, 0
      %p224 = por %p222, %p223
      %p225 = scmp.ne.s32.totalorder %s211, %s212
      %p226 = scmp.eq.s32.totalorder %s26, 1
      %p227 = por %p225, %p226
      %p229 = scmp.ne.s32.totalorder %s212, %s228
      %p230 = scmp.eq.s32.totalorder %s26, 0
      %p231 = por %p229, %p230
      %p232 = scmp.le.s32.totalorder 1, %s20
      %p233 = scmp.lt.s32.totalorder %s20, 3
      %p234 = pnand %p232, %p233
      %p235 = pneg %p234
      // Predicated region
      $region9: #{_lambda_.1} parent=5 // pred_check
        _
      $region10: #{_lambda_.1} parent=5 // pred_check_branch
        %237 = sbr.rel (%p234) target = $region12
      $region11: #{_lambda_.1} parent=5 // pred_region
        %s238 = ssub.s32 %s20, 1
        // Predicated region
        $region13: #{_lambda_.1} parent=11 // pred_check
          %p239 = pneg %p93
        $region14: #{_lambda_.1} parent=11 // pred_check_branch
          %241 = sbr.rel (%p239) target = $region16
        $region15: #{_lambda_.1} parent=11 // pred_region
          %s243 = ssub.s32 256, 256
          %244 = vsyncadd [#allocation5], %s243
          %s245 = sshll.u32 [#allocation6], 4
          %s246 = int_to_ptr.vmem [resolvable:$true] %s245
          %251 = dma.hbm_to_vmem [thread:$0]  %s2, 256, %s246, [#allocation5], 128, 128, 8
        $region16: #{_lambda_.1} parent=11 // pred_fallthru
          _
        // Predicated region
        $region17: #{_lambda_.1} parent=11 // pred_check
          %p252 = pneg %p114
        $region18: #{_lambda_.1} parent=11 // pred_check_branch
          %254 = sbr.rel (%p252) target = $region20
        $region19: #{_lambda_.1} parent=11 // pred_region
          _
        $region20: #{_lambda_.1} parent=11 // pred_fallthru
          _
        // Predicated region
        $region21: #{_lambda_.1} parent=11 // pred_check
          %p255 = pneg %p135
        $region22: #{_lambda_.1} parent=11 // pred_check_branch
          %257 = sbr.rel (%p255) target = $region24
        $region23: #{_lambda_.1} parent=11 // pred_region
          _
        $region24: #{_lambda_.1} parent=11 // pred_fallthru
          _
        // Predicated region
        $region25: #{_lambda_.1} parent=11 // pred_check
          %p258 = pneg %p156
        $region26: #{_lambda_.1} parent=11 // pred_check_branch
          %260 = sbr.rel (%p258) target = $region28
        $region27: #{_lambda_.1} parent=11 // pred_region
          _
        $region28: #{_lambda_.1} parent=11 // pred_fallthru
          _
        // Predicated region
        $region29: #{_lambda_.1} parent=11 // pred_check
          %p261 = pneg %p177
        $region30: #{_lambda_.1} parent=11 // pred_check_branch
          %263 = sbr.rel (%p261) target = $region32
        $region31: #{_lambda_.1} parent=11 // pred_region
          _
        $region32: #{_lambda_.1} parent=11 // pred_fallthru
          _
        // Predicated region
        $region33: #{_lambda_.1} parent=11 // pred_check
          %p264 = pneg %p198
        $region34: #{_lambda_.1} parent=11 // pred_check_branch
          %266 = sbr.rel (%p264) target = $region36
        $region35: #{_lambda_.1} parent=11 // pred_region
          _
        $region36: #{_lambda_.1} parent=11 // pred_fallthru
          _
      $region12: #{_lambda_.1} parent=5 // pred_fallthru
        _
      %p267 = scmp.lt.s32.totalorder %s20, 2
      // Predicated region
      $region37: #{_lambda_.1} parent=5 // pred_check
        %p268 = pneg %p267
      $region38: #{_lambda_.1} parent=5 // pred_check_branch
        %270 = sbr.rel (%p268) target = $region40
      $region39: #{_lambda_.1} parent=5 // pred_region
        // Predicated region
        $region41: #{_lambda_.1} parent=39 // pred_check
          %p271 = pneg %p40
        $region42: #{_lambda_.1} parent=39 // pred_check_branch
          %273 = sbr.rel (%p271) target = $region44
        $region43: #{_lambda_.1} parent=39 // pred_region
          %s274 = sand.u32 %s30, 1
          %s275 = scalar_lea.sflag [#allocation3], %s274
          %s276 = sand.u32 %s30, 1
          %s277 = smul.addr %s276, 64
          %s278 = scalar_lea.vmem [#allocation2], %s277
          %s279 = smul.u32 4, %s20
          %s281 = ssub.s32 1024, 1024
          %282 = vsyncadd %s275, %s281
          %s283 = smul.addr %s279, 2
          %s284 = smul.addr %s283, 128
          %s285 = scalar_lea.hbm %s0, %s284
          %s286 = sshll.u32 %s278, 4
          %s287 = int_to_ptr.vmem [resolvable:$true] %s286
          %292 = dma.hbm_to_vmem [thread:$0]  %s285, 1024, %s287, %s275, 128, 128, 8
        $region44: #{_lambda_.1} parent=39 // pred_fallthru
          _
        // Predicated region
        $region45: #{_lambda_.1} parent=39 // pred_check
          %p293 = pneg %p66
        $region46: #{_lambda_.1} parent=39 // pred_check_branch
          %295 = sbr.rel (%p293) target = $region48
        $region47: #{_lambda_.1} parent=39 // pred_region
          %s296 = sand.u32 %s20, 1
          %s297 = scalar_lea.sflag [#allocation5], %s296
          %s298 = sand.u32 %s56, 1
          %s299 = smul.addr %s298, 64
          %s300 = scalar_lea.vmem [#allocation4], %s299
          %s301 = smul.u32 4, %s20
          %s303 = ssub.s32 1024, 1024
          %304 = vsyncadd %s297, %s303
          %s305 = smul.addr %s301, 2
          %s306 = smul.addr %s305, 128
          %s307 = scalar_lea.hbm %s1, %s306
          %s308 = sshll.u32 %s300, 4
          %s309 = int_to_ptr.vmem [resolvable:$true] %s308
          %314 = dma.hbm_to_vmem [thread:$0]  %s307, 1024, %s309, %s297, 128, 128, 8
        $region48: #{_lambda_.1} parent=39 // pred_fallthru
          _
      $region40: #{_lambda_.1} parent=5 // pred_fallthru
        _
      %p315 = scmp.le.s32.totalorder 1, %s20
      %p316 = scmp.lt.s32.totalorder %s20, 3
      %p317 = pnand %p315, %p316
      %p318 = pneg %p317
      // Predicated region
      $region49: #{_lambda_.1} parent=5 // pred_check
        _
      $region50: #{_lambda_.1} parent=5 // pred_check_branch
        %320 = sbr.rel (%p317) target = $region52
      $region51: #{_lambda_.1} parent=5 // pred_region
        %s321 = ssub.s32 %s20, 1
        %s322 = sand.u32 %s33, 1
        %s323 = scalar_lea.sflag [#allocation3], %s322
        %s324 = sand.u32 %s33, 1
        %s325 = smul.addr %s324, 64
        %s326 = scalar_lea.vmem [#allocation2], %s325
        // Predicated region
        $region53: #{_lambda_.1} parent=51 // pred_check
          %p327 = pneg %p46
        $region54: #{_lambda_.1} parent=51 // pred_check_branch
          %329 = sbr.rel (%p327) target = $region56
        $region55: #{_lambda_.1} parent=51 // pred_region
          %330 = dma.done %s323, 1024
        $region56: #{_lambda_.1} parent=51 // pred_fallthru
          _
        %s331 = sand.u32 %s25, 1
        %s332 = scalar_lea.sflag [#allocation5], %s331
        %s333 = sand.u32 %s59, 1
        %s334 = smul.addr %s333, 64
        %s335 = scalar_lea.vmem [#allocation4], %s334
        // Predicated region
        $region57: #{_lambda_.1} parent=51 // pred_check
          %p336 = pneg %p72
        $region58: #{_lambda_.1} parent=51 // pred_check_branch
          %338 = sbr.rel (%p336) target = $region60
        $region59: #{_lambda_.1} parent=51 // pred_region
          %339 = dma.done %s332, 1024
        $region60: #{_lambda_.1} parent=51 // pred_fallthru
          _
        // Predicated region
        $region61: #{_lambda_.1} parent=51 // pred_check
          %p340 = pneg %p93
        $region62: #{_lambda_.1} parent=51 // pred_check_branch
          %342 = sbr.rel (%p340) target = $region64
        $region63: #{_lambda_.1} parent=51 // pred_region
          %343 = dma.done [#allocation5], 256
        $region64: #{_lambda_.1} parent=51 // pred_fallthru
          _
        %s344 = sand.u32 %s33, 1
        %s345 = scalar_lea.sflag [#allocation3], %s344
        %s346 = sand.u32 %s33, 1
        %s347 = smul.addr %s346, 64
        %s348 = scalar_lea.vmem [#allocation2], %s347
        %p349 = pneg %p46
        %p350 = pneg %p43
        %s351 = sand.u32 %s25, 1
        %s352 = scalar_lea.sflag [#allocation5], %s351
        %s353 = sand.u32 %s59, 1
        %s354 = smul.addr %s353, 64
        %s355 = scalar_lea.vmem [#allocation4], %s354
        %p356 = pneg %p72
        %p357 = pneg %p69
        %p358 = pneg %p93
        %p359 = pneg %p90
        %p360 = pneg %p114
        %p361 = pneg %p111
        %p362 = pneg %p135
        %p363 = pneg %p132
        %p364 = pneg %p156
        %p365 = pneg %p153
        %p366 = pneg %p177
        %p367 = pneg %p174
        %p368 = pneg %p198
        %p369 = pneg %p195
        %p370 = pneg %p224
        %p371 = pneg %p221
        %p372 = scmp.lt.s32.totalorder %s25, 1
        %s373 = scalar_select %p372, %s25, 1
        %s374 = scalar_lea.vmem %s8, %s373
        %s375 = smul.u32 4, %s25
        %s376 = smul.u32 4, %s25
        %p377 = scmp.lt.s32.totalorder %s25, 1
        %s378 = scalar_select %p377, %s25, 1
        %s379 = scalar_lea.vmem %s8, %s378
        %v380 = vld [vmem:[%s326] sm:$0xff]
        %v381 = vld [vmem:[%s326 + $0x8] sm:$0xff]
        %v382 = vld [vmem:[%s326 + $0x10] sm:$0xff]
        %v383 = vld [vmem:[%s326 + $0x18] sm:$0xff]
        %v384 = vld [vmem:[%s326 + $0x20] sm:$0xff]
        %v385 = vld [vmem:[%s326 + $0x28] sm:$0xff]
        %v386 = vld [vmem:[%s326 + $0x30] sm:$0xff]
        %v387 = vld [vmem:[%s326 + $0x38] sm:$0xff]
        %v388 = vld [vmem:[%s335] sm:$0xff]
        %v389 = vld [vmem:[%s335 + $0x8] sm:$0xff]
        %v390 = vld [vmem:[%s335 + $0x10] sm:$0xff]
        %v391 = vld [vmem:[%s335 + $0x18] sm:$0xff]
        %v392 = vld [vmem:[%s335 + $0x20] sm:$0xff]
        %v393 = vld [vmem:[%s335 + $0x28] sm:$0xff]
        %v394 = vld [vmem:[%s335 + $0x30] sm:$0xff]
        %v395 = vld [vmem:[%s335 + $0x38] sm:$0xff]
        %v396 = vsub.f32 %v380, %v388
        %v397 = vsub.f32 %v381, %v389
        %v398 = vsub.f32 %v382, %v390
        %v399 = vsub.f32 %v383, %v391
        %v400 = vsub.f32 %v384, %v392
        %v401 = vsub.f32 %v385, %v393
        %v402 = vsub.f32 %v386, %v394
        %v403 = vsub.f32 %v387, %v395
        %v404 = vmul.f32 %v396, %v396
        %v405 = vmul.f32 %v397, %v397
        %v406 = vmul.f32 %v398, %v398
        %v407 = vmul.f32 %v399, %v399
        %v408 = vmul.f32 %v400, %v400
        %v409 = vmul.f32 %v401, %v401
        %v410 = vmul.f32 %v402, %v402
        %v411 = vmul.f32 %v403, %v403
        %vm412 = vcmask 130048
        %v413 = vsel %vm412, %v404, 0.0
        %v414 = vsel %vm412, %v405, 0.0
        %v415 = vadd.f32 %v413, %v414
        %v416 = vsel %vm412, %v406, 0.0
        %v417 = vadd.f32 %v415, %v416
        %v418 = vsel %vm412, %v407, 0.0
        %v419 = vadd.f32 %v417, %v418
        %v420 = vsel %vm412, %v408, 0.0
        %v421 = vadd.f32 %v419, %v420
        %v422 = vsel %vm412, %v409, 0.0
        %v423 = vadd.f32 %v421, %v422
        %v424 = vsel %vm412, %v410, 0.0
        %v425 = vadd.f32 %v423, %v424
        %v426 = vsel %vm412, %v411, 0.0
        %v427 = vadd.f32 %v425, %v426
        %428 = vadd.xlane.f32.xlu0 %v427
        %v429 = vpop.xlane.xlu0 %428
        %v430 = vrot.slane %v429, 4
        %v431 = vadd.f32 %v429, %v430
        %v432 = vrot.slane %v431, 2
        %v433 = vadd.f32 %v431, %v432
        %v434 = vrot.slane %v433, 1
        %v435 = vadd.f32 %v433, %v434
        %s436 = vtos %v435
        %s437 = smul.f32 %s436, 0.00048828125
        %v438 = vld [vmem:[#allocation6] sm:$0xff]
        %v439 = vld [vmem:[#allocation6 + $0x8] sm:$0xff]
        %v440 = vld [vmem:[%s3] sm:$0xff]
        %v442 = vsel %vm412, %v396, 0
        %v445 = vsel %vm412, %v397, 0
        %v448 = vsel %vm412, %v398, 0
        %v451 = vsel %vm412, %v399, 0
        %v454 = vsel %vm412, %v400, 0
        %v457 = vsel %vm412, %v401, 0
        %v460 = vsel %vm412, %v402, 0
        %v463 = vsel %vm412, %v403, 0
        %465 = vmatprep.subr.mxu0 0.0
        %466 = vmatpush1.msra.mxu0 %v438
        %467 = vmatprep.subr.mxu0 0.0
        %468 = vmatpush1.msra.mxu0 %v439
        %469 = vmatprep.subr.mxu0 0.0
        %470 = vmatpush1.msra.mxu0 0.0
        %471 = vmatprep.subr.mxu0 0.0
        %472 = vmatpush1.msra.mxu0 0.0
        %473 = vmatprep.subr.mxu0 0.0
        %474 = vmatpush1.msra.mxu0 0.0
        %475 = vmatprep.subr.mxu0 0.0
        %476 = vmatpush1.msra.mxu0 0.0
        %477 = vmatprep.subr.mxu0 0.0
        %478 = vmatpush1.msra.mxu0 0.0
        %479 = vmatprep.subr.mxu0 0.0
        %480 = vmatpush1.msra.mxu0 0.0
        %481 = vmatprep.subr.mxu0 0.0
        %482 = vmatpush1.msra.mxu0 0.0
        %483 = vmatprep.subr.mxu0 0.0
        %484 = vmatpush1.msra.mxu0 0.0
        %485 = vmatprep.subr.mxu0 0.0
        %486 = vmatpush1.msra.mxu0 0.0
        %487 = vmatprep.subr.mxu0 0.0
        %488 = vmatpush1.msra.mxu0 0.0
        %489 = vmatprep.subr.mxu0 0.0
        %490 = vmatpush1.msra.mxu0 0.0
        %491 = vmatprep.subr.mxu0 0.0
        %492 = vmatpush1.msra.mxu0 0.0
        %493 = vmatprep.subr.mxu0 0.0
        %494 = vmatpush1.msra.mxu0 0.0
        %495 = vmatprep.subr.mxu0 0.0
        %496 = vmatpush1.msra.mxu0 0.0
        %497 = vmatprep.subr.mxu0 0.0
        %498 = vmatpush1.msra.mxu0 0.0
        %499 = vmatprep.subr.mxu0 0.0
        %500 = vmatpush1.msra.mxu0 0.0
        %501 = vmatprep.subr.mxu0 0.0
        %502 = vmatpush1.msra.mxu0 0.0
        %503 = vmatprep.subr.mxu0 0.0
        %504 = vmatpush1.msra.mxu0 0.0
        %505 = vmatprep.subr.mxu0 0.0
        %506 = vmatpush1.msra.mxu0 0.0
        %507 = vmatprep.subr.mxu0 0.0
        %508 = vmatpush1.msra.mxu0 0.0
        %509 = vmatprep.subr.mxu0 0.0
        %510 = vmatpush1.msra.mxu0 0.0
        %511 = vmatprep.subr.mxu0 0.0
        %512 = vmatpush1.msra.mxu0 0.0
        %513 = vmatprep.subr.mxu0 0.0
        %514 = vmatpush1.msra.mxu0 0.0
        %515 = vmatprep.subr.mxu0 0.0
        %516 = vmatpush1.msra.mxu0 0.0
        %517 = vmatprep.subr.mxu0 0.0
        %518 = vmatpush1.msra.mxu0 0.0
        %519 = vmatprep.subr.mxu0 0.0
        %520 = vmatpush1.msra.mxu0 0.0
        %521 = vmatprep.subr.mxu0 0.0
        %522 = vmatpush1.msra.mxu0 0.0
        %523 = vmatprep.subr.mxu0 0.0
        %524 = vmatpush1.msra.mxu0 0.0
        %525 = vmatprep.subr.mxu0 0.0
        %526 = vmatpush1.msra.mxu0 0.0
        %527 = vmatprep.subr.mxu0 0.0
        %528 = vmatpush1.msra.mxu0 0.0
        %529 = vmatprep.mubr.f32.mxu0 0.0
        %530 = vmatmul.mubr.f32.gmra.mrb[0].mxu0 %v442
        %v531 = vpop.f32.mrb[0].mxu0
        %v532 = vadd.f32 0.0, %v531
        %v533 = vpop.f32.mrb[0].mxu0
        %534 = vmatprep.mubr.f32.mxu0 0.0
        %535 = vmatmul.mubr.f32.gmra.mrb[0].mxu0 %v445
        %v536 = vpop.f32.mrb[0].mxu0
        %v537 = vadd.f32 0.0, %v536
        %v538 = vpop.f32.mrb[0].mxu0
        %539 = vmatprep.mubr.f32.mxu0 0.0
        %540 = vmatmul.mubr.f32.gmra.mrb[0].mxu0 %v448
        %v541 = vpop.f32.mrb[0].mxu0
        %v542 = vadd.f32 0.0, %v541
        %v543 = vpop.f32.mrb[0].mxu0
        %544 = vmatprep.mubr.f32.mxu0 0.0
        %545 = vmatmul.mubr.f32.gmra.mrb[0].mxu0 %v451
        %v546 = vpop.f32.mrb[0].mxu0
        %v547 = vadd.f32 0.0, %v546
        %v548 = vpop.f32.mrb[0].mxu0
        %549 = vmatprep.mubr.f32.mxu0 0.0
        %550 = vmatmul.mubr.f32.gmra.mrb[0].mxu0 %v454
        %v551 = vpop.f32.mrb[0].mxu0
        %v552 = vadd.f32 0.0, %v551
        %v553 = vpop.f32.mrb[0].mxu0
        %554 = vmatprep.mubr.f32.mxu0 0.0
        %555 = vmatmul.mubr.f32.gmra.mrb[0].mxu0 %v457
        %v556 = vpop.f32.mrb[0].mxu0
        %v557 = vadd.f32 0.0, %v556
        %v558 = vpop.f32.mrb[0].mxu0
        %559 = vmatprep.mubr.f32.mxu0 0.0
        %560 = vmatmul.mubr.f32.gmra.mrb[0].mxu0 %v460
        %v561 = vpop.f32.mrb[0].mxu0
        %v562 = vadd.f32 0.0, %v561
        %v563 = vpop.f32.mrb[0].mxu0
        %564 = vmatprep.mubr.f32.mxu0 0.0
        %565 = vmatmul.mubr.f32.gmra.mrb[0].mxu0 %v463
        %v566 = vpop.f32.mrb[0].mxu0
        %v567 = vadd.f32 0.0, %v566
        %v568 = vpop.f32.mrb[0].mxu0
        %569 = vdwg.mxu0
        %570 = vxpose.xlu0.b32.start [1/16] %v532, 128
        %571 = vxpose.xlu0.b32.cont [2/16] %v537, 128
        %572 = vxpose.xlu0.b32.cont [3/16] 0.0, 128
        %573 = vxpose.xlu0.b32.cont [4/16] 0.0, 128
        %574 = vxpose.xlu0.b32.cont [5/16] 0.0, 128
        %575 = vxpose.xlu0.b32.cont [6/16] 0.0, 128
        %576 = vxpose.xlu0.b32.cont [7/16] 0.0, 128
        %577 = vxpose.xlu0.b32.cont [8/16] 0.0, 128
        %578 = vxpose.xlu0.b32.cont [9/16] 0.0, 128
        %579 = vxpose.xlu0.b32.cont [10/16] 0.0, 128
        %580 = vxpose.xlu0.b32.cont [11/16] 0.0, 128
        %581 = vxpose.xlu0.b32.cont [12/16] 0.0, 128
        %582 = vxpose.xlu0.b32.cont [13/16] 0.0, 128
        %583 = vxpose.xlu0.b32.cont [14/16] 0.0, 128
        %584 = vxpose.xlu0.b32.cont [15/16] 0.0, 128
        %585 = vxpose.xlu0.b32.end [16/16] 0.0, 128
        %v586 = vpop.trf.xlu0
        %v587 = vpop.trf.xlu0
        %v588 = vpop.trf.xlu0
        %v589 = vpop.trf.xlu0
        %v590 = vpop.trf.xlu0
        %v591 = vpop.trf.xlu0
        %v592 = vpop.trf.xlu0
        %v593 = vpop.trf.xlu0
        %v594 = vpop.trf.xlu0
        %v595 = vpop.trf.xlu0
        %v596 = vpop.trf.xlu0
        %v597 = vpop.trf.xlu0
        %v598 = vpop.trf.xlu0
        %v599 = vpop.trf.xlu0
        %v600 = vpop.trf.xlu0
        %v601 = vpop.trf.xlu0
        %602 = vxpose.xlu0.b32.start [1/16] %v542, 128
        %603 = vxpose.xlu0.b32.cont [2/16] %v547, 128
        %604 = vxpose.xlu0.b32.cont [3/16] 0.0, 128
        %605 = vxpose.xlu0.b32.cont [4/16] 0.0, 128
        %606 = vxpose.xlu0.b32.cont [5/16] 0.0, 128
        %607 = vxpose.xlu0.b32.cont [6/16] 0.0, 128
        %608 = vxpose.xlu0.b32.cont [7/16] 0.0, 128
        %609 = vxpose.xlu0.b32.cont [8/16] 0.0, 128
        %610 = vxpose.xlu0.b32.cont [9/16] 0.0, 128
        %611 = vxpose.xlu0.b32.cont [10/16] 0.0, 128
        %612 = vxpose.xlu0.b32.cont [11/16] 0.0, 128
        %613 = vxpose.xlu0.b32.cont [12/16] 0.0, 128
        %614 = vxpose.xlu0.b32.cont [13/16] 0.0, 128
        %615 = vxpose.xlu0.b32.cont [14/16] 0.0, 128
        %616 = vxpose.xlu0.b32.cont [15/16] 0.0, 128
        %617 = vxpose.xlu0.b32.end [16/16] 0.0, 128
        %v618 = vpop.trf.xlu0
        %v619 = vpop.trf.xlu0
        %v620 = vpop.trf.xlu0
        %v621 = vpop.trf.xlu0
        %v622 = vpop.trf.xlu0
        %v623 = vpop.trf.xlu0
        %v624 = vpop.trf.xlu0
        %v625 = vpop.trf.xlu0
        %v626 = vpop.trf.xlu0
        %v627 = vpop.trf.xlu0
        %v628 = vpop.trf.xlu0
        %v629 = vpop.trf.xlu0
        %v630 = vpop.trf.xlu0
        %v631 = vpop.trf.xlu0
        %v632 = vpop.trf.xlu0
        %v633 = vpop.trf.xlu0
        %634 = vxpose.xlu0.b32.start [1/16] %v552, 128
        %635 = vxpose.xlu0.b32.cont [2/16] %v557, 128
        %636 = vxpose.xlu0.b32.cont [3/16] 0.0, 128
        %637 = vxpose.xlu0.b32.cont [4/16] 0.0, 128
        %638 = vxpose.xlu0.b32.cont [5/16] 0.0, 128
        %639 = vxpose.xlu0.b32.cont [6/16] 0.0, 128
        %640 = vxpose.xlu0.b32.cont [7/16] 0.0, 128
        %641 = vxpose.xlu0.b32.cont [8/16] 0.0, 128
        %642 = vxpose.xlu0.b32.cont [9/16] 0.0, 128
        %643 = vxpose.xlu0.b32.cont [10/16] 0.0, 128
        %644 = vxpose.xlu0.b32.cont [11/16] 0.0, 128
        %645 = vxpose.xlu0.b32.cont [12/16] 0.0, 128
        %646 = vxpose.xlu0.b32.cont [13/16] 0.0, 128
        %647 = vxpose.xlu0.b32.cont [14/16] 0.0, 128
        %648 = vxpose.xlu0.b32.cont [15/16] 0.0, 128
        %649 = vxpose.xlu0.b32.end [16/16] 0.0, 128
        %v650 = vpop.trf.xlu0
        %v651 = vpop.trf.xlu0
        %v652 = vpop.trf.xlu0
        %v653 = vpop.trf.xlu0
        %v654 = vpop.trf.xlu0
        %v655 = vpop.trf.xlu0
        %v656 = vpop.trf.xlu0
        %v657 = vpop.trf.xlu0
        %v658 = vpop.trf.xlu0
        %v659 = vpop.trf.xlu0
        %v660 = vpop.trf.xlu0
        %v661 = vpop.trf.xlu0
        %v662 = vpop.trf.xlu0
        %v663 = vpop.trf.xlu0
        %v664 = vpop.trf.xlu0
        %v665 = vpop.trf.xlu0
        %666 = vxpose.xlu0.b32.start [1/16] %v562, 128
        %667 = vxpose.xlu0.b32.cont [2/16] %v567, 128
        %668 = vxpose.xlu0.b32.cont [3/16] 0.0, 128
        %669 = vxpose.xlu0.b32.cont [4/16] 0.0, 128
        %670 = vxpose.xlu0.b32.cont [5/16] 0.0, 128
        %671 = vxpose.xlu0.b32.cont [6/16] 0.0, 128
        %672 = vxpose.xlu0.b32.cont [7/16] 0.0, 128
        %673 = vxpose.xlu0.b32.cont [8/16] 0.0, 128
        %674 = vxpose.xlu0.b32.cont [9/16] 0.0, 128
        %675 = vxpose.xlu0.b32.cont [10/16] 0.0, 128
        %676 = vxpose.xlu0.b32.cont [11/16] 0.0, 128
        %677 = vxpose.xlu0.b32.cont [12/16] 0.0, 128
        %678 = vxpose.xlu0.b32.cont [13/16] 0.0, 128
        %679 = vxpose.xlu0.b32.cont [14/16] 0.0, 128
        %680 = vxpose.xlu0.b32.cont [15/16] 0.0, 128
        %681 = vxpose.xlu0.b32.end [16/16] 0.0, 128
        %v682 = vpop.trf.xlu0
        %v683 = vpop.trf.xlu0
        %v684 = vpop.trf.xlu0
        %v685 = vpop.trf.xlu0
        %v686 = vpop.trf.xlu0
        %v687 = vpop.trf.xlu0
        %v688 = vpop.trf.xlu0
        %v689 = vpop.trf.xlu0
        %v690 = vpop.trf.xlu0
        %v691 = vpop.trf.xlu0
        %v692 = vpop.trf.xlu0
        %v693 = vpop.trf.xlu0
        %v694 = vpop.trf.xlu0
        %v695 = vpop.trf.xlu0
        %v696 = vpop.trf.xlu0
        %v697 = vpop.trf.xlu0
        %v699 = vsel %vm412, %v586, 0
        %v702 = vsel %vm412, %v618, 0
        %v705 = vsel %vm412, %v650, 0
        %v708 = vsel %vm412, %v682, 0
        %710 = vmatprep.subr.mxu0 0.0
        %711 = vmatpush1.msra.mxu0 %v438
        %712 = vmatprep.subr.mxu0 0.0
        %713 = vmatpush1.msra.mxu0 %v439
        %714 = vmatprep.subr.mxu0 0.0
        %715 = vmatpush1.msra.mxu0 0.0
        %716 = vmatprep.subr.mxu0 0.0
        %717 = vmatpush1.msra.mxu0 0.0
        %718 = vmatprep.subr.mxu0 0.0
        %719 = vmatpush1.msra.mxu0 0.0
        %720 = vmatprep.subr.mxu0 0.0
        %721 = vmatpush1.msra.mxu0 0.0
        %722 = vmatprep.subr.mxu0 0.0
        %723 = vmatpush1.msra.mxu0 0.0
        %724 = vmatprep.subr.mxu0 0.0
        %725 = vmatpush1.msra.mxu0 0.0
        %726 = vmatprep.subr.mxu0 0.0
        %727 = vmatpush1.msra.mxu0 0.0
        %728 = vmatprep.subr.mxu0 0.0
        %729 = vmatpush1.msra.mxu0 0.0
        %730 = vmatprep.subr.mxu0 0.0
        %731 = vmatpush1.msra.mxu0 0.0
        %732 = vmatprep.subr.mxu0 0.0
        %733 = vmatpush1.msra.mxu0 0.0
        %734 = vmatprep.subr.mxu0 0.0
        %735 = vmatpush1.msra.mxu0 0.0
        %736 = vmatprep.subr.mxu0 0.0
        %737 = vmatpush1.msra.mxu0 0.0
        %738 = vmatprep.subr.mxu0 0.0
        %739 = vmatpush1.msra.mxu0 0.0
        %740 = vmatprep.subr.mxu0 0.0
        %741 = vmatpush1.msra.mxu0 0.0
        %742 = vmatprep.subr.mxu0 0.0
        %743 = vmatpush1.msra.mxu0 0.0
        %744 = vmatprep.subr.mxu0 0.0
        %745 = vmatpush1.msra.mxu0 0.0
        %746 = vmatprep.subr.mxu0 0.0
        %747 = vmatpush1.msra.mxu0 0.0
        %748 = vmatprep.subr.mxu0 0.0
        %749 = vmatpush1.msra.mxu0 0.0
        %750 = vmatprep.subr.mxu0 0.0
        %751 = vmatpush1.msra.mxu0 0.0
        %752 = vmatprep.subr.mxu0 0.0
        %753 = vmatpush1.msra.mxu0 0.0
        %754 = vmatprep.subr.mxu0 0.0
        %755 = vmatpush1.msra.mxu0 0.0
        %756 = vmatprep.subr.mxu0 0.0
        %757 = vmatpush1.msra.mxu0 0.0
        %758 = vmatprep.subr.mxu0 0.0
        %759 = vmatpush1.msra.mxu0 0.0
        %760 = vmatprep.subr.mxu0 0.0
        %761 = vmatpush1.msra.mxu0 0.0
        %762 = vmatprep.subr.mxu0 0.0
        %763 = vmatpush1.msra.mxu0 0.0
        %764 = vmatprep.subr.mxu0 0.0
        %765 = vmatpush1.msra.mxu0 0.0
        %766 = vmatprep.subr.mxu0 0.0
        %767 = vmatpush1.msra.mxu0 0.0
        %768 = vmatprep.subr.mxu0 0.0
        %769 = vmatpush1.msra.mxu0 0.0
        %770 = vmatprep.subr.mxu0 0.0
        %771 = vmatpush1.msra.mxu0 0.0
        %772 = vmatprep.subr.mxu0 0.0
        %773 = vmatpush1.msra.mxu0 0.0
        %774 = vmatprep.mubr.f32.mxu0 0.0
        %775 = vmatmul.mubr.f32.gmra.mrb[0].mxu0 %v699
        %v776 = vpop.f32.mrb[0].mxu0
        %v777 = vadd.f32 0.0, %v776
        %v778 = vpop.f32.mrb[0].mxu0
        %779 = vmatprep.mubr.f32.mxu0 0.0
        %780 = vmatmul.mubr.f32.gmra.mrb[0].mxu0 %v702
        %v781 = vpop.f32.mrb[0].mxu0
        %v782 = vadd.f32 0.0, %v781
        %v783 = vpop.f32.mrb[0].mxu0
        %784 = vmatprep.mubr.f32.mxu0 0.0
        %785 = vmatmul.mubr.f32.gmra.mrb[0].mxu0 %v705
        %v786 = vpop.f32.mrb[0].mxu0
        %v787 = vadd.f32 0.0, %v786
        %v788 = vpop.f32.mrb[0].mxu0
        %789 = vmatprep.mubr.f32.mxu0 0.0
        %790 = vmatmul.mubr.f32.gmra.mrb[0].mxu0 %v708
        %v791 = vpop.f32.mrb[0].mxu0
        %v792 = vadd.f32 0.0, %v791
        %v793 = vpop.f32.mrb[0].mxu0
        %794 = vdwg.mxu0
        %vm795 = vcmask 64512
        %v797 = vsel %vm795, %v777, 0
        %v800 = vsel %vm795, %v782, 0
        %v803 = vsel %vm795, %v787, 0
        %v806 = vsel %vm795, %v792, 0
        %808 = vmatprep.subr.mxu0 0.0
        %809 = vmatpush1.msra.mxu0 %v440
        %810 = vmatprep.subr.mxu0 0.0
        %811 = vmatpush1.msra.mxu0 0.0
        %812 = vmatprep.subr.mxu0 0.0
        %813 = vmatpush1.msra.mxu0 0.0
        %814 = vmatprep.subr.mxu0 0.0
        %815 = vmatpush1.msra.mxu0 0.0
        %816 = vmatprep.subr.mxu0 0.0
        %817 = vmatpush1.msra.mxu0 0.0
        %818 = vmatprep.subr.mxu0 0.0
        %819 = vmatpush1.msra.mxu0 0.0
        %820 = vmatprep.subr.mxu0 0.0
        %821 = vmatpush1.msra.mxu0 0.0
        %822 = vmatprep.subr.mxu0 0.0
        %823 = vmatpush1.msra.mxu0 0.0
        %824 = vmatprep.subr.mxu0 0.0
        %825 = vmatpush1.msra.mxu0 0.0
        %826 = vmatprep.subr.mxu0 0.0
        %827 = vmatpush1.msra.mxu0 0.0
        %828 = vmatprep.subr.mxu0 0.0
        %829 = vmatpush1.msra.mxu0 0.0
        %830 = vmatprep.subr.mxu0 0.0
        %831 = vmatpush1.msra.mxu0 0.0
        %832 = vmatprep.subr.mxu0 0.0
        %833 = vmatpush1.msra.mxu0 0.0
        %834 = vmatprep.subr.mxu0 0.0
        %835 = vmatpush1.msra.mxu0 0.0
        %836 = vmatprep.subr.mxu0 0.0
        %837 = vmatpush1.msra.mxu0 0.0
        %838 = vmatprep.subr.mxu0 0.0
        %839 = vmatpush1.msra.mxu0 0.0
        %840 = vmatprep.subr.mxu0 0.0
        %841 = vmatpush1.msra.mxu0 0.0
        %842 = vmatprep.subr.mxu0 0.0
        %843 = vmatpush1.msra.mxu0 0.0
        %844 = vmatprep.subr.mxu0 0.0
        %845 = vmatpush1.msra.mxu0 0.0
        %846 = vmatprep.subr.mxu0 0.0
        %847 = vmatpush1.msra.mxu0 0.0
        %848 = vmatprep.subr.mxu0 0.0
        %849 = vmatpush1.msra.mxu0 0.0
        %850 = vmatprep.subr.mxu0 0.0
        %851 = vmatpush1.msra.mxu0 0.0
        %852 = vmatprep.subr.mxu0 0.0
        %853 = vmatpush1.msra.mxu0 0.0
        %854 = vmatprep.subr.mxu0 0.0
        %855 = vmatpush1.msra.mxu0 0.0
        %856 = vmatprep.subr.mxu0 0.0
        %857 = vmatpush1.msra.mxu0 0.0
        %858 = vmatprep.subr.mxu0 0.0
        %859 = vmatpush1.msra.mxu0 0.0
        %860 = vmatprep.subr.mxu0 0.0
        %861 = vmatpush1.msra.mxu0 0.0
        %862 = vmatprep.subr.mxu0 0.0
        %863 = vmatpush1.msra.mxu0 0.0
        %864 = vmatprep.subr.mxu0 0.0
        %865 = vmatpush1.msra.mxu0 0.0
        %866 = vmatprep.subr.mxu0 0.0
        %867 = vmatpush1.msra.mxu0 0.0
        %868 = vmatprep.subr.mxu0 0.0
        %869 = vmatpush1.msra.mxu0 0.0
        %870 = vmatprep.subr.mxu0 0.0
        %871 = vmatpush1.msra.mxu0 0.0
        %872 = vmatprep.mubr.f32.mxu0 0.0
        %873 = vmatmul.mubr.f32.gmra.mrb[0].mxu0 %v797
        %v874 = vpop.f32.mrb[0].mxu0
        %v875 = vadd.f32 0.0, %v874
        %v876 = vpop.f32.mrb[0].mxu0
        %877 = vmatprep.mubr.f32.mxu0 0.0
        %878 = vmatmul.mubr.f32.gmra.mrb[0].mxu0 %v800
        %v879 = vpop.f32.mrb[0].mxu0
        %v880 = vadd.f32 0.0, %v879
        %v881 = vpop.f32.mrb[0].mxu0
        %882 = vmatprep.mubr.f32.mxu0 0.0
        %883 = vmatmul.mubr.f32.gmra.mrb[0].mxu0 %v803
        %v884 = vpop.f32.mrb[0].mxu0
        %v885 = vadd.f32 0.0, %v884
        %v886 = vpop.f32.mrb[0].mxu0
        %887 = vmatprep.mubr.f32.mxu0 0.0
        %888 = vmatmul.mubr.f32.gmra.mrb[0].mxu0 %v806
        %v889 = vpop.f32.mrb[0].mxu0
        %v890 = vadd.f32 0.0, %v889
        %v891 = vpop.f32.mrb[0].mxu0
        %892 = vdwg.mxu0
        %893 = vxpose.xlu0.b32.start [1/16] %v875, 128
        %894 = vxpose.xlu0.b32.cont [2/16] 0.0, 128
        %895 = vxpose.xlu0.b32.cont [3/16] 0.0, 128
        %896 = vxpose.xlu0.b32.cont [4/16] 0.0, 128
        %897 = vxpose.xlu0.b32.cont [5/16] 0.0, 128
        %898 = vxpose.xlu0.b32.cont [6/16] 0.0, 128
        %899 = vxpose.xlu0.b32.cont [7/16] 0.0, 128
        %900 = vxpose.xlu0.b32.cont [8/16] 0.0, 128
        %901 = vxpose.xlu0.b32.cont [9/16] 0.0, 128
        %902 = vxpose.xlu0.b32.cont [10/16] 0.0, 128
        %903 = vxpose.xlu0.b32.cont [11/16] 0.0, 128
        %904 = vxpose.xlu0.b32.cont [12/16] 0.0, 128
        %905 = vxpose.xlu0.b32.cont [13/16] 0.0, 128
        %906 = vxpose.xlu0.b32.cont [14/16] 0.0, 128
        %907 = vxpose.xlu0.b32.cont [15/16] 0.0, 128
        %908 = vxpose.xlu0.b32.end [16/16] 0.0, 128
        %v909 = vpop.trf.xlu0
        %v910 = vpop.trf.xlu0
        %v911 = vpop.trf.xlu0
        %v912 = vpop.trf.xlu0
        %v913 = vpop.trf.xlu0
        %v914 = vpop.trf.xlu0
        %v915 = vpop.trf.xlu0
        %v916 = vpop.trf.xlu0
        %v917 = vpop.trf.xlu0
        %v918 = vpop.trf.xlu0
        %v919 = vpop.trf.xlu0
        %v920 = vpop.trf.xlu0
        %v921 = vpop.trf.xlu0
        %v922 = vpop.trf.xlu0
        %v923 = vpop.trf.xlu0
        %v924 = vpop.trf.xlu0
        %925 = vxpose.xlu0.b32.start [1/16] %v880, 128
        %926 = vxpose.xlu0.b32.cont [2/16] 0.0, 128
        %927 = vxpose.xlu0.b32.cont [3/16] 0.0, 128
        %928 = vxpose.xlu0.b32.cont [4/16] 0.0, 128
        %929 = vxpose.xlu0.b32.cont [5/16] 0.0, 128
        %930 = vxpose.xlu0.b32.cont [6/16] 0.0, 128
        %931 = vxpose.xlu0.b32.cont [7/16] 0.0, 128
        %932 = vxpose.xlu0.b32.cont [8/16] 0.0, 128
        %933 = vxpose.xlu0.b32.cont [9/16] 0.0, 128
        %934 = vxpose.xlu0.b32.cont [10/16] 0.0, 128
        %935 = vxpose.xlu0.b32.cont [11/16] 0.0, 128
        %936 = vxpose.xlu0.b32.cont [12/16] 0.0, 128
        %937 = vxpose.xlu0.b32.cont [13/16] 0.0, 128
        %938 = vxpose.xlu0.b32.cont [14/16] 0.0, 128
        %939 = vxpose.xlu0.b32.cont [15/16] 0.0, 128
        %940 = vxpose.xlu0.b32.end [16/16] 0.0, 128
        %v941 = vpop.trf.xlu0
        %v942 = vpop.trf.xlu0
        %v943 = vpop.trf.xlu0
        %v944 = vpop.trf.xlu0
        %v945 = vpop.trf.xlu0
        %v946 = vpop.trf.xlu0
        %v947 = vpop.trf.xlu0
        %v948 = vpop.trf.xlu0
        %v949 = vpop.trf.xlu0
        %v950 = vpop.trf.xlu0
        %v951 = vpop.trf.xlu0
        %v952 = vpop.trf.xlu0
        %v953 = vpop.trf.xlu0
        %v954 = vpop.trf.xlu0
        %v955 = vpop.trf.xlu0
        %v956 = vpop.trf.xlu0
        %957 = vxpose.xlu0.b32.start [1/16] %v885, 128
        %958 = vxpose.xlu0.b32.cont [2/16] 0.0, 128
        %959 = vxpose.xlu0.b32.cont [3/16] 0.0, 128
        %960 = vxpose.xlu0.b32.cont [4/16] 0.0, 128
        %961 = vxpose.xlu0.b32.cont [5/16] 0.0, 128
        %962 = vxpose.xlu0.b32.cont [6/16] 0.0, 128
        %963 = vxpose.xlu0.b32.cont [7/16] 0.0, 128
        %964 = vxpose.xlu0.b32.cont [8/16] 0.0, 128
        %965 = vxpose.xlu0.b32.cont [9/16] 0.0, 128
        %966 = vxpose.xlu0.b32.cont [10/16] 0.0, 128
        %967 = vxpose.xlu0.b32.cont [11/16] 0.0, 128
        %968 = vxpose.xlu0.b32.cont [12/16] 0.0, 128
        %969 = vxpose.xlu0.b32.cont [13/16] 0.0, 128
        %970 = vxpose.xlu0.b32.cont [14/16] 0.0, 128
        %971 = vxpose.xlu0.b32.cont [15/16] 0.0, 128
        %972 = vxpose.xlu0.b32.end [16/16] 0.0, 128
        %v973 = vpop.trf.xlu0
        %v974 = vpop.trf.xlu0
        %v975 = vpop.trf.xlu0
        %v976 = vpop.trf.xlu0
        %v977 = vpop.trf.xlu0
        %v978 = vpop.trf.xlu0
        %v979 = vpop.trf.xlu0
        %v980 = vpop.trf.xlu0
        %v981 = vpop.trf.xlu0
        %v982 = vpop.trf.xlu0
        %v983 = vpop.trf.xlu0
        %v984 = vpop.trf.xlu0
        %v985 = vpop.trf.xlu0
        %v986 = vpop.trf.xlu0
        %v987 = vpop.trf.xlu0
        %v988 = vpop.trf.xlu0
        %989 = vxpose.xlu0.b32.start [1/16] %v890, 128
        %990 = vxpose.xlu0.b32.cont [2/16] 0.0, 128
        %991 = vxpose.xlu0.b32.cont [3/16] 0.0, 128
        %992 = vxpose.xlu0.b32.cont [4/16] 0.0, 128
        %993 = vxpose.xlu0.b32.cont [5/16] 0.0, 128
        %994 = vxpose.xlu0.b32.cont [6/16] 0.0, 128
        %995 = vxpose.xlu0.b32.cont [7/16] 0.0, 128
        %996 = vxpose.xlu0.b32.cont [8/16] 0.0, 128
        %997 = vxpose.xlu0.b32.cont [9/16] 0.0, 128
        %998 = vxpose.xlu0.b32.cont [10/16] 0.0, 128
        %999 = vxpose.xlu0.b32.cont [11/16] 0.0, 128
        %1000 = vxpose.xlu0.b32.cont [12/16] 0.0, 128
        %1001 = vxpose.xlu0.b32.cont [13/16] 0.0, 128
        %1002 = vxpose.xlu0.b32.cont [14/16] 0.0, 128
        %1003 = vxpose.xlu0.b32.cont [15/16] 0.0, 128
        %1004 = vxpose.xlu0.b32.end [16/16] 0.0, 128
        %v1005 = vpop.trf.xlu0
        %v1006 = vpop.trf.xlu0
        %v1007 = vpop.trf.xlu0
        %v1008 = vpop.trf.xlu0
        %v1009 = vpop.trf.xlu0
        %v1010 = vpop.trf.xlu0
        %v1011 = vpop.trf.xlu0
        %v1012 = vpop.trf.xlu0
        %v1013 = vpop.trf.xlu0
        %v1014 = vpop.trf.xlu0
        %v1015 = vpop.trf.xlu0
        %v1016 = vpop.trf.xlu0
        %v1017 = vpop.trf.xlu0
        %v1018 = vpop.trf.xlu0
        %v1019 = vpop.trf.xlu0
        %v1020 = vpop.trf.xlu0
        %v1022 = vsel %vm795, %v909, 0
        %v1025 = vsel %vm795, %v910, 0
        %v1028 = vsel %vm795, %v941, 0
        %v1031 = vsel %vm795, %v942, 0
        %v1034 = vsel %vm795, %v973, 0
        %v1037 = vsel %vm795, %v974, 0
        %v1040 = vsel %vm795, %v1005, 0
        %v1043 = vsel %vm795, %v1006, 0
        %1045 = vmatprep.subr.mxu0 0.0
        %1046 = vmatpush1.msra.mxu0 %v440
        %1047 = vmatprep.subr.mxu0 0.0
        %1048 = vmatpush1.msra.mxu0 0.0
        %1049 = vmatprep.subr.mxu0 0.0
        %1050 = vmatpush1.msra.mxu0 0.0
        %1051 = vmatprep.subr.mxu0 0.0
        %1052 = vmatpush1.msra.mxu0 0.0
        %1053 = vmatprep.subr.mxu0 0.0
        %1054 = vmatpush1.msra.mxu0 0.0
        %1055 = vmatprep.subr.mxu0 0.0
        %1056 = vmatpush1.msra.mxu0 0.0
        %1057 = vmatprep.subr.mxu0 0.0
        %1058 = vmatpush1.msra.mxu0 0.0
        %1059 = vmatprep.subr.mxu0 0.0
        %1060 = vmatpush1.msra.mxu0 0.0
        %1061 = vmatprep.subr.mxu0 0.0
        %1062 = vmatpush1.msra.mxu0 0.0
        %1063 = vmatprep.subr.mxu0 0.0
        %1064 = vmatpush1.msra.mxu0 0.0
        %1065 = vmatprep.subr.mxu0 0.0
        %1066 = vmatpush1.msra.mxu0 0.0
        %1067 = vmatprep.subr.mxu0 0.0
        %1068 = vmatpush1.msra.mxu0 0.0
        %1069 = vmatprep.subr.mxu0 0.0
        %1070 = vmatpush1.msra.mxu0 0.0
        %1071 = vmatprep.subr.mxu0 0.0
        %1072 = vmatpush1.msra.mxu0 0.0
        %1073 = vmatprep.subr.mxu0 0.0
        %1074 = vmatpush1.msra.mxu0 0.0
        %1075 = vmatprep.subr.mxu0 0.0
        %1076 = vmatpush1.msra.mxu0 0.0
        %1077 = vmatprep.subr.mxu0 0.0
        %1078 = vmatpush1.msra.mxu0 0.0
        %1079 = vmatprep.subr.mxu0 0.0
        %1080 = vmatpush1.msra.mxu0 0.0
        %1081 = vmatprep.subr.mxu0 0.0
        %1082 = vmatpush1.msra.mxu0 0.0
        %1083 = vmatprep.subr.mxu0 0.0
        %1084 = vmatpush1.msra.mxu0 0.0
        %1085 = vmatprep.subr.mxu0 0.0
        %1086 = vmatpush1.msra.mxu0 0.0
        %1087 = vmatprep.subr.mxu0 0.0
        %1088 = vmatpush1.msra.mxu0 0.0
        %1089 = vmatprep.subr.mxu0 0.0
        %1090 = vmatpush1.msra.mxu0 0.0
        %1091 = vmatprep.subr.mxu0 0.0
        %1092 = vmatpush1.msra.mxu0 0.0
        %1093 = vmatprep.subr.mxu0 0.0
        %1094 = vmatpush1.msra.mxu0 0.0
        %1095 = vmatprep.subr.mxu0 0.0
        %1096 = vmatpush1.msra.mxu0 0.0
        %1097 = vmatprep.subr.mxu0 0.0
        %1098 = vmatpush1.msra.mxu0 0.0
        %1099 = vmatprep.subr.mxu0 0.0
        %1100 = vmatpush1.msra.mxu0 0.0
        %1101 = vmatprep.subr.mxu0 0.0
        %1102 = vmatpush1.msra.mxu0 0.0
        %1103 = vmatprep.subr.mxu0 0.0
        %1104 = vmatpush1.msra.mxu0 0.0
        %1105 = vmatprep.subr.mxu0 0.0
        %1106 = vmatpush1.msra.mxu0 0.0
        %1107 = vmatprep.subr.mxu0 0.0
        %1108 = vmatpush1.msra.mxu0 0.0
        %1109 = vmatprep.mubr.f32.mxu0 0.0
        %1110 = vmatmul.mubr.f32.gmra.mrb[0].mxu0 %v1022
        %v1111 = vpop.f32.mrb[0].mxu0
        %v1112 = vadd.f32 0.0, %v1111
        %v1113 = vpop.f32.mrb[0].mxu0
        %1114 = vmatprep.mubr.f32.mxu0 0.0
        %1115 = vmatmul.mubr.f32.gmra.mrb[0].mxu0 %v1025
        %v1116 = vpop.f32.mrb[0].mxu0
        %v1117 = vadd.f32 0.0, %v1116
        %v1118 = vpop.f32.mrb[0].mxu0
        %1119 = vmatprep.mubr.f32.mxu0 0.0
        %1120 = vmatmul.mubr.f32.gmra.mrb[0].mxu0 %v1028
        %v1121 = vpop.f32.mrb[0].mxu0
        %v1122 = vadd.f32 0.0, %v1121
        %v1123 = vpop.f32.mrb[0].mxu0
        %1124 = vmatprep.mubr.f32.mxu0 0.0
        %1125 = vmatmul.mubr.f32.gmra.mrb[0].mxu0 %v1031
        %v1126 = vpop.f32.mrb[0].mxu0
        %v1127 = vadd.f32 0.0, %v1126
        %v1128 = vpop.f32.mrb[0].mxu0
        %1129 = vmatprep.mubr.f32.mxu0 0.0
        %1130 = vmatmul.mubr.f32.gmra.mrb[0].mxu0 %v1034
        %v1131 = vpop.f32.mrb[0].mxu0
        %v1132 = vadd.f32 0.0, %v1131
        %v1133 = vpop.f32.mrb[0].mxu0
        %1134 = vmatprep.mubr.f32.mxu0 0.0
        %1135 = vmatmul.mubr.f32.gmra.mrb[0].mxu0 %v1037
        %v1136 = vpop.f32.mrb[0].mxu0
        %v1137 = vadd.f32 0.0, %v1136
        %v1138 = vpop.f32.mrb[0].mxu0
        %1139 = vmatprep.mubr.f32.mxu0 0.0
        %1140 = vmatmul.mubr.f32.gmra.mrb[0].mxu0 %v1040
        %v1141 = vpop.f32.mrb[0].mxu0
        %v1142 = vadd.f32 0.0, %v1141
        %v1143 = vpop.f32.mrb[0].mxu0
        %1144 = vmatprep.mubr.f32.mxu0 0.0
        %1145 = vmatmul.mubr.f32.gmra.mrb[0].mxu0 %v1043
        %v1146 = vpop.f32.mrb[0].mxu0
        %v1147 = vadd.f32 0.0, %v1146
        %v1148 = vpop.f32.mrb[0].mxu0
        %1149 = vdwg.mxu0
        %v1150 = vsub.f32 %v396, %v1112
        %v1151 = vsub.f32 %v397, %v1117
        %v1152 = vsub.f32 %v398, %v1122
        %v1153 = vsub.f32 %v399, %v1127
        %v1154 = vsub.f32 %v400, %v1132
        %v1155 = vsub.f32 %v401, %v1137
        %v1156 = vsub.f32 %v402, %v1142
        %v1157 = vsub.f32 %v403, %v1147
        %v1158 = vmul.f32 %v1150, %v1150
        %v1159 = vmul.f32 %v1151, %v1151
        %v1160 = vmul.f32 %v1152, %v1152
        %v1161 = vmul.f32 %v1153, %v1153
        %v1162 = vmul.f32 %v1154, %v1154
        %v1163 = vmul.f32 %v1155, %v1155
        %v1164 = vmul.f32 %v1156, %v1156
        %v1165 = vmul.f32 %v1157, %v1157
        %v1166 = vsel %vm412, %v1158, 0.0
        %v1167 = vsel %vm412, %v1159, 0.0
        %v1168 = vadd.f32 %v1166, %v1167
        %v1169 = vsel %vm412, %v1160, 0.0
        %v1170 = vadd.f32 %v1168, %v1169
        %v1171 = vsel %vm412, %v1161, 0.0
        %v1172 = vadd.f32 %v1170, %v1171
        %v1173 = vsel %vm412, %v1162, 0.0
        %v1174 = vadd.f32 %v1172, %v1173
        %v1175 = vsel %vm412, %v1163, 0.0
        %v1176 = vadd.f32 %v1174, %v1175
        %v1177 = vsel %vm412, %v1164, 0.0
        %v1178 = vadd.f32 %v1176, %v1177
        %v1179 = vsel %vm412, %v1165, 0.0
        %v1180 = vadd.f32 %v1178, %v1179
        %1181 = vadd.xlane.f32.xlu0 %v1180
        %v1182 = vpop.xlane.xlu0 %1181
        %v1183 = vrot.slane %v1182, 4
        %v1184 = vadd.f32 %v1182, %v1183
        %v1185 = vrot.slane %v1184, 2
        %v1186 = vadd.f32 %v1184, %v1185
        %v1187 = vrot.slane %v1186, 1
        %v1188 = vadd.f32 %v1186, %v1187
        %s1189 = vtos %v1188
        %s1190 = smul.f32 %s1189, 0.0009765625
        %s1191 = sadd.f32 %s437, %s1190
        %v1192 = vld [vmem:[%s4] sm:$0xff]
        %v1193 = vld [vmem:[%s5] sm:$0xf]
        %1194 = vmatprep.subr.mxu0 0.0
        %1195 = vmatpush1.msra.mxu0 %v1192
        %1196 = vmatprep.subr.mxu0 0.0
        %1197 = vmatpush1.msra.mxu0 0.0
        %1198 = vmatprep.subr.mxu0 0.0
        %1199 = vmatpush1.msra.mxu0 0.0
        %1200 = vmatprep.subr.mxu0 0.0
        %1201 = vmatpush1.msra.mxu0 0.0
        %1202 = vmatprep.subr.mxu0 0.0
        %1203 = vmatpush1.msra.mxu0 0.0
        %1204 = vmatprep.subr.mxu0 0.0
        %1205 = vmatpush1.msra.mxu0 0.0
        %1206 = vmatprep.subr.mxu0 0.0
        %1207 = vmatpush1.msra.mxu0 0.0
        %1208 = vmatprep.subr.mxu0 0.0
        %1209 = vmatpush1.msra.mxu0 0.0
        %1210 = vmatprep.subr.mxu0 0.0
        %1211 = vmatpush1.msra.mxu0 0.0
        %1212 = vmatprep.subr.mxu0 0.0
        %1213 = vmatpush1.msra.mxu0 0.0
        %1214 = vmatprep.subr.mxu0 0.0
        %1215 = vmatpush1.msra.mxu0 0.0
        %1216 = vmatprep.subr.mxu0 0.0
        %1217 = vmatpush1.msra.mxu0 0.0
        %1218 = vmatprep.subr.mxu0 0.0
        %1219 = vmatpush1.msra.mxu0 0.0
        %1220 = vmatprep.subr.mxu0 0.0
        %1221 = vmatpush1.msra.mxu0 0.0
        %1222 = vmatprep.subr.mxu0 0.0
        %1223 = vmatpush1.msra.mxu0 0.0
        %1224 = vmatprep.subr.mxu0 0.0
        %1225 = vmatpush1.msra.mxu0 0.0
        %1226 = vmatprep.subr.mxu0 0.0
        %1227 = vmatpush1.msra.mxu0 0.0
        %1228 = vmatprep.subr.mxu0 0.0
        %1229 = vmatpush1.msra.mxu0 0.0
        %1230 = vmatprep.subr.mxu0 0.0
        %1231 = vmatpush1.msra.mxu0 0.0
        %1232 = vmatprep.subr.mxu0 0.0
        %1233 = vmatpush1.msra.mxu0 0.0
        %1234 = vmatprep.subr.mxu0 0.0
        %1235 = vmatpush1.msra.mxu0 0.0
        %1236 = vmatprep.subr.mxu0 0.0
        %1237 = vmatpush1.msra.mxu0 0.0
        %1238 = vmatprep.subr.mxu0 0.0
        %1239 = vmatpush1.msra.mxu0 0.0
        %1240 = vmatprep.subr.mxu0 0.0
        %1241 = vmatpush1.msra.mxu0 0.0
        %1242 = vmatprep.subr.mxu0 0.0
        %1243 = vmatpush1.msra.mxu0 0.0
        %1244 = vmatprep.subr.mxu0 0.0
        %1245 = vmatpush1.msra.mxu0 0.0
        %1246 = vmatprep.subr.mxu0 0.0
        %1247 = vmatpush1.msra.mxu0 0.0
        %1248 = vmatprep.subr.mxu0 0.0
        %1249 = vmatpush1.msra.mxu0 0.0
        %1250 = vmatprep.subr.mxu0 0.0
        %1251 = vmatpush1.msra.mxu0 0.0
        %1252 = vmatprep.subr.mxu0 0.0
        %1253 = vmatpush1.msra.mxu0 0.0
        %1254 = vmatprep.subr.mxu0 0.0
        %1255 = vmatpush1.msra.mxu0 0.0
        %1256 = vmatprep.subr.mxu0 0.0
        %1257 = vmatpush1.msra.mxu0 0.0
        %1258 = vmatprep.mubr.f32.mxu0 0.0
        %1259 = vmatmul.mubr.f32.gmra.mrb[0].mxu0 %v797
        %v1260 = vpop.f32.mrb[0].mxu0
        %v1261 = vadd.f32 0.0, %v1260
        %v1262 = vpop.f32.mrb[0].mxu0
        %1263 = vmatprep.mubr.f32.mxu0 0.0
        %1264 = vmatmul.mubr.f32.gmra.mrb[0].mxu0 %v800
        %v1265 = vpop.f32.mrb[0].mxu0
        %v1266 = vadd.f32 0.0, %v1265
        %v1267 = vpop.f32.mrb[0].mxu0
        %1268 = vmatprep.mubr.f32.mxu0 0.0
        %1269 = vmatmul.mubr.f32.gmra.mrb[0].mxu0 %v803
        %v1270 = vpop.f32.mrb[0].mxu0
        %v1271 = vadd.f32 0.0, %v1270
        %v1272 = vpop.f32.mrb[0].mxu0
        %1273 = vmatprep.mubr.f32.mxu0 0.0
        %1274 = vmatmul.mubr.f32.gmra.mrb[0].mxu0 %v806
        %v1275 = vpop.f32.mrb[0].mxu0
        %v1276 = vadd.f32 0.0, %v1275
        %v1277 = vpop.f32.mrb[0].mxu0
        %1278 = vdwg.mxu0
        %1279 = vxpose.xlu0.b32.start [1/16] %v1261, 128
        %1280 = vxpose.xlu0.b32.cont [2/16] 0.0, 128
        %1281 = vxpose.xlu0.b32.cont [3/16] 0.0, 128
        %1282 = vxpose.xlu0.b32.cont [4/16] 0.0, 128
        %1283 = vxpose.xlu0.b32.cont [5/16] 0.0, 128
        %1284 = vxpose.xlu0.b32.cont [6/16] 0.0, 128
        %1285 = vxpose.xlu0.b32.cont [7/16] 0.0, 128
        %1286 = vxpose.xlu0.b32.cont [8/16] 0.0, 128
        %1287 = vxpose.xlu0.b32.cont [9/16] 0.0, 128
        %1288 = vxpose.xlu0.b32.cont [10/16] 0.0, 128
        %1289 = vxpose.xlu0.b32.cont [11/16] 0.0, 128
        %1290 = vxpose.xlu0.b32.cont [12/16] 0.0, 128
        %1291 = vxpose.xlu0.b32.cont [13/16] 0.0, 128
        %1292 = vxpose.xlu0.b32.cont [14/16] 0.0, 128
        %1293 = vxpose.xlu0.b32.cont [15/16] 0.0, 128
        %1294 = vxpose.xlu0.b32.end [16/16] 0.0, 128
        %v1295 = vpop.trf.xlu0
        %v1296 = vpop.trf.xlu0
        %v1297 = vpop.trf.xlu0
        %v1298 = vpop.trf.xlu0
        %v1299 = vpop.trf.xlu0
        %v1300 = vpop.trf.xlu0
        %v1301 = vpop.trf.xlu0
        %v1302 = vpop.trf.xlu0
        %v1303 = vpop.trf.xlu0
        %v1304 = vpop.trf.xlu0
        %v1305 = vpop.trf.xlu0
        %v1306 = vpop.trf.xlu0
        %v1307 = vpop.trf.xlu0
        %v1308 = vpop.trf.xlu0
        %v1309 = vpop.trf.xlu0
        %v1310 = vpop.trf.xlu0
        %1311 = vxpose.xlu0.b32.start [1/16] %v1266, 128
        %1312 = vxpose.xlu0.b32.cont [2/16] 0.0, 128
        %1313 = vxpose.xlu0.b32.cont [3/16] 0.0, 128
        %1314 = vxpose.xlu0.b32.cont [4/16] 0.0, 128
        %1315 = vxpose.xlu0.b32.cont [5/16] 0.0, 128
        %1316 = vxpose.xlu0.b32.cont [6/16] 0.0, 128
        %1317 = vxpose.xlu0.b32.cont [7/16] 0.0, 128
        %1318 = vxpose.xlu0.b32.cont [8/16] 0.0, 128
        %1319 = vxpose.xlu0.b32.cont [9/16] 0.0, 128
        %1320 = vxpose.xlu0.b32.cont [10/16] 0.0, 128
        %1321 = vxpose.xlu0.b32.cont [11/16] 0.0, 128
        %1322 = vxpose.xlu0.b32.cont [12/16] 0.0, 128
        %1323 = vxpose.xlu0.b32.cont [13/16] 0.0, 128
        %1324 = vxpose.xlu0.b32.cont [14/16] 0.0, 128
        %1325 = vxpose.xlu0.b32.cont [15/16] 0.0, 128
        %1326 = vxpose.xlu0.b32.end [16/16] 0.0, 128
        %v1327 = vpop.trf.xlu0
        %v1328 = vpop.trf.xlu0
        %v1329 = vpop.trf.xlu0
        %v1330 = vpop.trf.xlu0
        %v1331 = vpop.trf.xlu0
        %v1332 = vpop.trf.xlu0
        %v1333 = vpop.trf.xlu0
        %v1334 = vpop.trf.xlu0
        %v1335 = vpop.trf.xlu0
        %v1336 = vpop.trf.xlu0
        %v1337 = vpop.trf.xlu0
        %v1338 = vpop.trf.xlu0
        %v1339 = vpop.trf.xlu0
        %v1340 = vpop.trf.xlu0
        %v1341 = vpop.trf.xlu0
        %v1342 = vpop.trf.xlu0
        %1343 = vxpose.xlu0.b32.start [1/16] %v1271, 128
        %1344 = vxpose.xlu0.b32.cont [2/16] 0.0, 128
        %1345 = vxpose.xlu0.b32.cont [3/16] 0.0, 128
        %1346 = vxpose.xlu0.b32.cont [4/16] 0.0, 128
        %1347 = vxpose.xlu0.b32.cont [5/16] 0.0, 128
        %1348 = vxpose.xlu0.b32.cont [6/16] 0.0, 128
        %1349 = vxpose.xlu0.b32.cont [7/16] 0.0, 128
        %1350 = vxpose.xlu0.b32.cont [8/16] 0.0, 128
        %1351 = vxpose.xlu0.b32.cont [9/16] 0.0, 128
        %1352 = vxpose.xlu0.b32.cont [10/16] 0.0, 128
        %1353 = vxpose.xlu0.b32.cont [11/16] 0.0, 128
        %1354 = vxpose.xlu0.b32.cont [12/16] 0.0, 128
        %1355 = vxpose.xlu0.b32.cont [13/16] 0.0, 128
        %1356 = vxpose.xlu0.b32.cont [14/16] 0.0, 128
        %1357 = vxpose.xlu0.b32.cont [15/16] 0.0, 128
        %1358 = vxpose.xlu0.b32.end [16/16] 0.0, 128
        %v1359 = vpop.trf.xlu0
        %v1360 = vpop.trf.xlu0
        %v1361 = vpop.trf.xlu0
        %v1362 = vpop.trf.xlu0
        %v1363 = vpop.trf.xlu0
        %v1364 = vpop.trf.xlu0
        %v1365 = vpop.trf.xlu0
        %v1366 = vpop.trf.xlu0
        %v1367 = vpop.trf.xlu0
        %v1368 = vpop.trf.xlu0
        %v1369 = vpop.trf.xlu0
        %v1370 = vpop.trf.xlu0
        %v1371 = vpop.trf.xlu0
        %v1372 = vpop.trf.xlu0
        %v1373 = vpop.trf.xlu0
        %v1374 = vpop.trf.xlu0
        %1375 = vxpose.xlu0.b32.start [1/16] %v1276, 128
        %1376 = vxpose.xlu0.b32.cont [2/16] 0.0, 128
        %1377 = vxpose.xlu0.b32.cont [3/16] 0.0, 128
        %1378 = vxpose.xlu0.b32.cont [4/16] 0.0, 128
        %1379 = vxpose.xlu0.b32.cont [5/16] 0.0, 128
        %1380 = vxpose.xlu0.b32.cont [6/16] 0.0, 128
        %1381 = vxpose.xlu0.b32.cont [7/16] 0.0, 128
        %1382 = vxpose.xlu0.b32.cont [8/16] 0.0, 128
        %1383 = vxpose.xlu0.b32.cont [9/16] 0.0, 128
        %1384 = vxpose.xlu0.b32.cont [10/16] 0.0, 128
        %1385 = vxpose.xlu0.b32.cont [11/16] 0.0, 128
        %1386 = vxpose.xlu0.b32.cont [12/16] 0.0, 128
        %1387 = vxpose.xlu0.b32.cont [13/16] 0.0, 128
        %1388 = vxpose.xlu0.b32.cont [14/16] 0.0, 128
        %1389 = vxpose.xlu0.b32.cont [15/16] 0.0, 128
        %1390 = vxpose.xlu0.b32.end [16/16] 0.0, 128
        %v1391 = vpop.trf.xlu0
        %v1392 = vpop.trf.xlu0
        %v1393 = vpop.trf.xlu0
        %v1394 = vpop.trf.xlu0
        %v1395 = vpop.trf.xlu0
        %v1396 = vpop.trf.xlu0
        %v1397 = vpop.trf.xlu0
        %v1398 = vpop.trf.xlu0
        %v1399 = vpop.trf.xlu0
        %v1400 = vpop.trf.xlu0
        %v1401 = vpop.trf.xlu0
        %v1402 = vpop.trf.xlu0
        %v1403 = vpop.trf.xlu0
        %v1404 = vpop.trf.xlu0
        %v1405 = vpop.trf.xlu0
        %v1406 = vpop.trf.xlu0
        %v1411 = vcombine.low %v1295, %v1327
        %v1412 = vcombine.low %v1359, %v1391
        %v1413 = vsel %vm795, %v1411, 0
        %v1415 = vsel %vm795, %v1412, 0
        %1417 = vmatprep.subr.mxu0 0.0
        %1418 = vmatpush1.msra.mxu0 %v1192
        %1419 = vmatprep.subr.mxu0 0.0
        %1420 = vmatpush1.msra.mxu0 0.0
        %1421 = vmatprep.subr.mxu0 0.0
        %1422 = vmatpush1.msra.mxu0 0.0
        %1423 = vmatprep.subr.mxu0 0.0
        %1424 = vmatpush1.msra.mxu0 0.0
        %1425 = vmatprep.subr.mxu0 0.0
        %1426 = vmatpush1.msra.mxu0 0.0
        %1427 = vmatprep.subr.mxu0 0.0
        %1428 = vmatpush1.msra.mxu0 0.0
        %1429 = vmatprep.subr.mxu0 0.0
        %1430 = vmatpush1.msra.mxu0 0.0
        %1431 = vmatprep.subr.mxu0 0.0
        %1432 = vmatpush1.msra.mxu0 0.0
        %1433 = vmatprep.subr.mxu0 0.0
        %1434 = vmatpush1.msra.mxu0 0.0
        %1435 = vmatprep.subr.mxu0 0.0
        %1436 = vmatpush1.msra.mxu0 0.0
        %1437 = vmatprep.subr.mxu0 0.0
        %1438 = vmatpush1.msra.mxu0 0.0
        %1439 = vmatprep.subr.mxu0 0.0
        %1440 = vmatpush1.msra.mxu0 0.0
        %1441 = vmatprep.subr.mxu0 0.0
        %1442 = vmatpush1.msra.mxu0 0.0
        %1443 = vmatprep.subr.mxu0 0.0
        %1444 = vmatpush1.msra.mxu0 0.0
        %1445 = vmatprep.subr.mxu0 0.0
        %1446 = vmatpush1.msra.mxu0 0.0
        %1447 = vmatprep.subr.mxu0 0.0
        %1448 = vmatpush1.msra.mxu0 0.0
        %1449 = vmatprep.subr.mxu0 0.0
        %1450 = vmatpush1.msra.mxu0 0.0
        %1451 = vmatprep.subr.mxu0 0.0
        %1452 = vmatpush1.msra.mxu0 0.0
        %1453 = vmatprep.subr.mxu0 0.0
        %1454 = vmatpush1.msra.mxu0 0.0
        %1455 = vmatprep.subr.mxu0 0.0
        %1456 = vmatpush1.msra.mxu0 0.0
        %1457 = vmatprep.subr.mxu0 0.0
        %1458 = vmatpush1.msra.mxu0 0.0
        %1459 = vmatprep.subr.mxu0 0.0
        %1460 = vmatpush1.msra.mxu0 0.0
        %1461 = vmatprep.subr.mxu0 0.0
        %1462 = vmatpush1.msra.mxu0 0.0
        %1463 = vmatprep.subr.mxu0 0.0
        %1464 = vmatpush1.msra.mxu0 0.0
        %1465 = vmatprep.subr.mxu0 0.0
        %1466 = vmatpush1.msra.mxu0 0.0
        %1467 = vmatprep.subr.mxu0 0.0
        %1468 = vmatpush1.msra.mxu0 0.0
        %1469 = vmatprep.subr.mxu0 0.0
        %1470 = vmatpush1.msra.mxu0 0.0
        %1471 = vmatprep.subr.mxu0 0.0
        %1472 = vmatpush1.msra.mxu0 0.0
        %1473 = vmatprep.subr.mxu0 0.0
        %1474 = vmatpush1.msra.mxu0 0.0
        %1475 = vmatprep.subr.mxu0 0.0
        %1476 = vmatpush1.msra.mxu0 0.0
        %1477 = vmatprep.subr.mxu0 0.0
        %1478 = vmatpush1.msra.mxu0 0.0
        %1479 = vmatprep.subr.mxu0 0.0
        %1480 = vmatpush1.msra.mxu0 0.0
        %1481 = vmatprep.mubr.f32.mxu0 0.0
        %1482 = vmatmul.mubr.f32.gmra.mrb[0].mxu0 %v1413
        %v1483 = vpop.f32.mrb[0].mxu0
        %v1484 = vadd.f32 0.0, %v1483
        %v1485 = vpop.f32.mrb[0].mxu0
        %1486 = vmatprep.mubr.f32.mxu0 0.0
        %1487 = vmatmul.mubr.f32.gmra.mrb[0].mxu0 %v1415
        %v1488 = vpop.f32.mrb[0].mxu0
        %v1489 = vadd.f32 0.0, %v1488
        %v1490 = vpop.f32.mrb[0].mxu0
        %1491 = vdwg.mxu0
        %v1494 = vcombine.high %v1484, %v1484
        %v1495 = vcombine.high %v1489, %v1489
        %vm1498 = vcmask 31744
        %v1499 = vsel %vm1498, %v1484, 0
        %v1501 = vsel %vm1498, %v1489, 0
        %vm1503 = vcmask 1043456
        %v1505 = vsel %vm1503, %v1193, 0
        %1507 = vmatprep.subr.mxu0 0.0
        %1508 = vmatpush1.msra.mxu0 %v1505
        %1509 = vmatprep.subr.mxu0 0.0
        %1510 = vmatpush1.msra.mxu0 0.0
        %1511 = vmatprep.subr.mxu0 0.0
        %1512 = vmatpush1.msra.mxu0 0.0
        %1513 = vmatprep.subr.mxu0 0.0
        %1514 = vmatpush1.msra.mxu0 0.0
        %1515 = vmatprep.subr.mxu0 0.0
        %1516 = vmatpush1.msra.mxu0 0.0
        %1517 = vmatprep.subr.mxu0 0.0
        %1518 = vmatpush1.msra.mxu0 0.0
        %1519 = vmatprep.subr.mxu0 0.0
        %1520 = vmatpush1.msra.mxu0 0.0
        %1521 = vmatprep.subr.mxu0 0.0
        %1522 = vmatpush1.msra.mxu0 0.0
        %1523 = vmatprep.subr.mxu0 0.0
        %1524 = vmatpush1.msra.mxu0 0.0
        %1525 = vmatprep.subr.mxu0 0.0
        %1526 = vmatpush1.msra.mxu0 0.0
        %1527 = vmatprep.subr.mxu0 0.0
        %1528 = vmatpush1.msra.mxu0 0.0
        %1529 = vmatprep.subr.mxu0 0.0
        %1530 = vmatpush1.msra.mxu0 0.0
        %1531 = vmatprep.subr.mxu0 0.0
        %1532 = vmatpush1.msra.mxu0 0.0
        %1533 = vmatprep.subr.mxu0 0.0
        %1534 = vmatpush1.msra.mxu0 0.0
        %1535 = vmatprep.subr.mxu0 0.0
        %1536 = vmatpush1.msra.mxu0 0.0
        %1537 = vmatprep.subr.mxu0 0.0
        %1538 = vmatpush1.msra.mxu0 0.0
        %1539 = vmatprep.subr.mxu0 0.0
        %1540 = vmatpush1.msra.mxu0 0.0
        %1541 = vmatprep.subr.mxu0 0.0
        %1542 = vmatpush1.msra.mxu0 0.0
        %1543 = vmatprep.subr.mxu0 0.0
        %1544 = vmatpush1.msra.mxu0 0.0
        %1545 = vmatprep.subr.mxu0 0.0
        %1546 = vmatpush1.msra.mxu0 0.0
        %1547 = vmatprep.subr.mxu0 0.0
        %1548 = vmatpush1.msra.mxu0 0.0
        %1549 = vmatprep.subr.mxu0 0.0
        %1550 = vmatpush1.msra.mxu0 0.0
        %1551 = vmatprep.subr.mxu0 0.0
        %1552 = vmatpush1.msra.mxu0 0.0
        %1553 = vmatprep.subr.mxu0 0.0
        %1554 = vmatpush1.msra.mxu0 0.0
        %1555 = vmatprep.subr.mxu0 0.0
        %1556 = vmatpush1.msra.mxu0 0.0
        %1557 = vmatprep.subr.mxu0 0.0
        %1558 = vmatpush1.msra.mxu0 0.0
        %1559 = vmatprep.subr.mxu0 0.0
        %1560 = vmatpush1.msra.mxu0 0.0
        %1561 = vmatprep.subr.mxu0 0.0
        %1562 = vmatpush1.msra.mxu0 0.0
        %1563 = vmatprep.subr.mxu0 0.0
        %1564 = vmatpush1.msra.mxu0 0.0
        %1565 = vmatprep.subr.mxu0 0.0
        %1566 = vmatpush1.msra.mxu0 0.0
        %1567 = vmatprep.subr.mxu0 0.0
        %1568 = vmatpush1.msra.mxu0 0.0
        %1569 = vmatprep.subr.mxu0 0.0
        %1570 = vmatpush1.msra.mxu0 0.0
        %1571 = vmatprep.mubr.f32.mxu0 0.0
        %1572 = vmatmul.mubr.f32.gmra.mrb[0].mxu0 %v1499
        %v1573 = vpop.f32.mrb[0].mxu0
        %v1574 = vadd.f32 0.0, %v1573
        %v1575 = vpop.f32.mrb[0].mxu0
        %1576 = vmatprep.mubr.f32.mxu0 0.0
        %1577 = vmatmul.mubr.f32.gmra.mrb[0].mxu0 %v1501
        %v1578 = vpop.f32.mrb[0].mxu0
        %v1579 = vadd.f32 0.0, %v1578
        %v1580 = vpop.f32.mrb[0].mxu0
        %1581 = vdwg.mxu0
        %v1584 = vcombine.high %v1574, %v1574
        %v1585 = vcombine.high %v1579, %v1579
        %1588 = vxpose.xlu0.b32.start [1/16] %v1574, 128
        %1589 = vxpose.xlu0.b32.cont [2/16] 0.0, 128
        %1590 = vxpose.xlu0.b32.cont [3/16] 0.0, 128
        %1591 = vxpose.xlu0.b32.cont [4/16] 0.0, 128
        %1592 = vxpose.xlu0.b32.cont [5/16] 0.0, 128
        %1593 = vxpose.xlu0.b32.cont [6/16] 0.0, 128
        %1594 = vxpose.xlu0.b32.cont [7/16] 0.0, 128
        %1595 = vxpose.xlu0.b32.cont [8/16] 0.0, 128
        %1596 = vxpose.xlu0.b32.cont [9/16] 0.0, 128
        %1597 = vxpose.xlu0.b32.cont [10/16] 0.0, 128
        %1598 = vxpose.xlu0.b32.cont [11/16] 0.0, 128
        %1599 = vxpose.xlu0.b32.cont [12/16] 0.0, 128
        %1600 = vxpose.xlu0.b32.cont [13/16] 0.0, 128
        %1601 = vxpose.xlu0.b32.cont [14/16] 0.0, 128
        %1602 = vxpose.xlu0.b32.cont [15/16] 0.0, 128
        %1603 = vxpose.xlu0.b32.end [16/16] 0.0, 128
        %v1604 = vpop.trf.xlu0
        %v1605 = vpop.trf.xlu0
        %v1606 = vpop.trf.xlu0
        %v1607 = vpop.trf.xlu0
        %v1608 = vpop.trf.xlu0
        %v1609 = vpop.trf.xlu0
        %v1610 = vpop.trf.xlu0
        %v1611 = vpop.trf.xlu0
        %v1612 = vpop.trf.xlu0
        %v1613 = vpop.trf.xlu0
        %v1614 = vpop.trf.xlu0
        %v1615 = vpop.trf.xlu0
        %v1616 = vpop.trf.xlu0
        %v1617 = vpop.trf.xlu0
        %v1618 = vpop.trf.xlu0
        %v1619 = vpop.trf.xlu0
        %1620 = vxpose.xlu0.b32.start [1/16] %v1584, 128
        %1621 = vxpose.xlu0.b32.cont [2/16] 0.0, 128
        %1622 = vxpose.xlu0.b32.cont [3/16] 0.0, 128
        %1623 = vxpose.xlu0.b32.cont [4/16] 0.0, 128
        %1624 = vxpose.xlu0.b32.cont [5/16] 0.0, 128
        %1625 = vxpose.xlu0.b32.cont [6/16] 0.0, 128
        %1626 = vxpose.xlu0.b32.cont [7/16] 0.0, 128
        %1627 = vxpose.xlu0.b32.cont [8/16] 0.0, 128
        %1628 = vxpose.xlu0.b32.cont [9/16] 0.0, 128
        %1629 = vxpose.xlu0.b32.cont [10/16] 0.0, 128
        %1630 = vxpose.xlu0.b32.cont [11/16] 0.0, 128
        %1631 = vxpose.xlu0.b32.cont [12/16] 0.0, 128
        %1632 = vxpose.xlu0.b32.cont [13/16] 0.0, 128
        %1633 = vxpose.xlu0.b32.cont [14/16] 0.0, 128
        %1634 = vxpose.xlu0.b32.cont [15/16] 0.0, 128
        %1635 = vxpose.xlu0.b32.end [16/16] 0.0, 128
        %v1636 = vpop.trf.xlu0
        %v1637 = vpop.trf.xlu0
        %v1638 = vpop.trf.xlu0
        %v1639 = vpop.trf.xlu0
        %v1640 = vpop.trf.xlu0
        %v1641 = vpop.trf.xlu0
        %v1642 = vpop.trf.xlu0
        %v1643 = vpop.trf.xlu0
        %v1644 = vpop.trf.xlu0
        %v1645 = vpop.trf.xlu0
        %v1646 = vpop.trf.xlu0
        %v1647 = vpop.trf.xlu0
        %v1648 = vpop.trf.xlu0
        %v1649 = vpop.trf.xlu0
        %v1650 = vpop.trf.xlu0
        %v1651 = vpop.trf.xlu0
        %1652 = vxpose.xlu0.b32.start [1/16] %v1579, 128
        %1653 = vxpose.xlu0.b32.cont [2/16] 0.0, 128
        %1654 = vxpose.xlu0.b32.cont [3/16] 0.0, 128
        %1655 = vxpose.xlu0.b32.cont [4/16] 0.0, 128
        %1656 = vxpose.xlu0.b32.cont [5/16] 0.0, 128
        %1657 = vxpose.xlu0.b32.cont [6/16] 0.0, 128
        %1658 = vxpose.xlu0.b32.cont [7/16] 0.0, 128
        %1659 = vxpose.xlu0.b32.cont [8/16] 0.0, 128
        %1660 = vxpose.xlu0.b32.cont [9/16] 0.0, 128
        %1661 = vxpose.xlu0.b32.cont [10/16] 0.0, 128
        %1662 = vxpose.xlu0.b32.cont [11/16] 0.0, 128
        %1663 = vxpose.xlu0.b32.cont [12/16] 0.0, 128
        %1664 = vxpose.xlu0.b32.cont [13/16] 0.0, 128
        %1665 = vxpose.xlu0.b32.cont [14/16] 0.0, 128
        %1666 = vxpose.xlu0.b32.cont [15/16] 0.0, 128
        %1667 = vxpose.xlu0.b32.end [16/16] 0.0, 128
        %v1668 = vpop.trf.xlu0
        %v1669 = vpop.trf.xlu0
        %v1670 = vpop.trf.xlu0
        %v1671 = vpop.trf.xlu0
        %v1672 = vpop.trf.xlu0
        %v1673 = vpop.trf.xlu0
        %v1674 = vpop.trf.xlu0
        %v1675 = vpop.trf.xlu0
        %v1676 = vpop.trf.xlu0
        %v1677 = vpop.trf.xlu0
        %v1678 = vpop.trf.xlu0
        %v1679 = vpop.trf.xlu0
        %v1680 = vpop.trf.xlu0
        %v1681 = vpop.trf.xlu0
        %v1682 = vpop.trf.xlu0
        %v1683 = vpop.trf.xlu0
        %1684 = vxpose.xlu0.b32.start [1/16] %v1585, 128
        %1685 = vxpose.xlu0.b32.cont [2/16] 0.0, 128
        %1686 = vxpose.xlu0.b32.cont [3/16] 0.0, 128
        %1687 = vxpose.xlu0.b32.cont [4/16] 0.0, 128
        %1688 = vxpose.xlu0.b32.cont [5/16] 0.0, 128
        %1689 = vxpose.xlu0.b32.cont [6/16] 0.0, 128
        %1690 = vxpose.xlu0.b32.cont [7/16] 0.0, 128
        %1691 = vxpose.xlu0.b32.cont [8/16] 0.0, 128
        %1692 = vxpose.xlu0.b32.cont [9/16] 0.0, 128
        %1693 = vxpose.xlu0.b32.cont [10/16] 0.0, 128
        %1694 = vxpose.xlu0.b32.cont [11/16] 0.0, 128
        %1695 = vxpose.xlu0.b32.cont [12/16] 0.0, 128
        %1696 = vxpose.xlu0.b32.cont [13/16] 0.0, 128
        %1697 = vxpose.xlu0.b32.cont [14/16] 0.0, 128
        %1698 = vxpose.xlu0.b32.cont [15/16] 0.0, 128
        %1699 = vxpose.xlu0.b32.end [16/16] 0.0, 128
        %v1700 = vpop.trf.xlu0
        %v1701 = vpop.trf.xlu0
        %v1702 = vpop.trf.xlu0
        %v1703 = vpop.trf.xlu0
        %v1704 = vpop.trf.xlu0
        %v1705 = vpop.trf.xlu0
        %v1706 = vpop.trf.xlu0
        %v1707 = vpop.trf.xlu0
        %v1708 = vpop.trf.xlu0
        %v1709 = vpop.trf.xlu0
        %v1710 = vpop.trf.xlu0
        %v1711 = vpop.trf.xlu0
        %v1712 = vpop.trf.xlu0
        %v1713 = vpop.trf.xlu0
        %v1714 = vpop.trf.xlu0
        %v1715 = vpop.trf.xlu0
        %v1717 = vsel %vm1498, %v1604, 0
        %v1720 = vsel %vm1498, %v1636, 0
        %v1723 = vsel %vm1498, %v1668, 0
        %v1726 = vsel %vm1498, %v1700, 0
        %1728 = vmatprep.subr.mxu0 0.0
        %1729 = vmatpush1.msra.mxu0 %v1505
        %1730 = vmatprep.subr.mxu0 0.0
        %1731 = vmatpush1.msra.mxu0 0.0
        %1732 = vmatprep.subr.mxu0 0.0
        %1733 = vmatpush1.msra.mxu0 0.0
        %1734 = vmatprep.subr.mxu0 0.0
        %1735 = vmatpush1.msra.mxu0 0.0
        %1736 = vmatprep.subr.mxu0 0.0
        %1737 = vmatpush1.msra.mxu0 0.0
        %1738 = vmatprep.subr.mxu0 0.0
        %1739 = vmatpush1.msra.mxu0 0.0
        %1740 = vmatprep.subr.mxu0 0.0
        %1741 = vmatpush1.msra.mxu0 0.0
        %1742 = vmatprep.subr.mxu0 0.0
        %1743 = vmatpush1.msra.mxu0 0.0
        %1744 = vmatprep.subr.mxu0 0.0
        %1745 = vmatpush1.msra.mxu0 0.0
        %1746 = vmatprep.subr.mxu0 0.0
        %1747 = vmatpush1.msra.mxu0 0.0
        %1748 = vmatprep.subr.mxu0 0.0
        %1749 = vmatpush1.msra.mxu0 0.0
        %1750 = vmatprep.subr.mxu0 0.0
        %1751 = vmatpush1.msra.mxu0 0.0
        %1752 = vmatprep.subr.mxu0 0.0
        %1753 = vmatpush1.msra.mxu0 0.0
        %1754 = vmatprep.subr.mxu0 0.0
        %1755 = vmatpush1.msra.mxu0 0.0
        %1756 = vmatprep.subr.mxu0 0.0
        %1757 = vmatpush1.msra.mxu0 0.0
        %1758 = vmatprep.subr.mxu0 0.0
        %1759 = vmatpush1.msra.mxu0 0.0
        %1760 = vmatprep.subr.mxu0 0.0
        %1761 = vmatpush1.msra.mxu0 0.0
        %1762 = vmatprep.subr.mxu0 0.0
        %1763 = vmatpush1.msra.mxu0 0.0
        %1764 = vmatprep.subr.mxu0 0.0
        %1765 = vmatpush1.msra.mxu0 0.0
        %1766 = vmatprep.subr.mxu0 0.0
        %1767 = vmatpush1.msra.mxu0 0.0
        %1768 = vmatprep.subr.mxu0 0.0
        %1769 = vmatpush1.msra.mxu0 0.0
        %1770 = vmatprep.subr.mxu0 0.0
        %1771 = vmatpush1.msra.mxu0 0.0
        %1772 = vmatprep.subr.mxu0 0.0
        %1773 = vmatpush1.msra.mxu0 0.0
        %1774 = vmatprep.subr.mxu0 0.0
        %1775 = vmatpush1.msra.mxu0 0.0
        %1776 = vmatprep.subr.mxu0 0.0
        %1777 = vmatpush1.msra.mxu0 0.0
        %1778 = vmatprep.subr.mxu0 0.0
        %1779 = vmatpush1.msra.mxu0 0.0
        %1780 = vmatprep.subr.mxu0 0.0
        %1781 = vmatpush1.msra.mxu0 0.0
        %1782 = vmatprep.subr.mxu0 0.0
        %1783 = vmatpush1.msra.mxu0 0.0
        %1784 = vmatprep.subr.mxu0 0.0
        %1785 = vmatpush1.msra.mxu0 0.0
        %1786 = vmatprep.subr.mxu0 0.0
        %1787 = vmatpush1.msra.mxu0 0.0
        %1788 = vmatprep.subr.mxu0 0.0
        %1789 = vmatpush1.msra.mxu0 0.0
        %1790 = vmatprep.subr.mxu0 0.0
        %1791 = vmatpush1.msra.mxu0 0.0
        %1792 = vmatprep.mubr.f32.mxu0 0.0
        %1793 = vmatmul.mubr.f32.gmra.mrb[0].mxu0 %v1717
        %v1794 = vpop.f32.mrb[0].mxu0
        %v1795 = vadd.f32 0.0, %v1794
        %v1796 = vpop.f32.mrb[0].mxu0
        %1797 = vmatprep.mubr.f32.mxu0 0.0
        %1798 = vmatmul.mubr.f32.gmra.mrb[0].mxu0 %v1720
        %v1799 = vpop.f32.mrb[0].mxu0
        %v1800 = vadd.f32 0.0, %v1799
        %v1801 = vpop.f32.mrb[0].mxu0
        %1802 = vmatprep.mubr.f32.mxu0 0.0
        %1803 = vmatmul.mubr.f32.gmra.mrb[0].mxu0 %v1723
        %v1804 = vpop.f32.mrb[0].mxu0
        %v1805 = vadd.f32 0.0, %v1804
        %v1806 = vpop.f32.mrb[0].mxu0
        %1807 = vmatprep.mubr.f32.mxu0 0.0
        %1808 = vmatmul.mubr.f32.gmra.mrb[0].mxu0 %v1726
        %v1809 = vpop.f32.mrb[0].mxu0
        %v1810 = vadd.f32 0.0, %v1809
        %v1811 = vpop.f32.mrb[0].mxu0
        %1812 = vdwg.mxu0
        %v1813 = vsub.f32 %v777, %v1795
        %v1814 = vsub.f32 %v782, %v1800
        %v1815 = vsub.f32 %v787, %v1805
        %v1816 = vsub.f32 %v792, %v1810
        %v1817 = vmul.f32 %v1813, %v1813
        %v1818 = vmul.f32 %v1814, %v1814
        %v1819 = vmul.f32 %v1815, %v1815
        %v1820 = vmul.f32 %v1816, %v1816
        %v1821 = vsel %vm795, %v1817, 0.0
        %v1822 = vsel %vm795, %v1818, 0.0
        %v1823 = vadd.f32 %v1821, %v1822
        %v1824 = vsel %vm795, %v1819, 0.0
        %v1825 = vadd.f32 %v1823, %v1824
        %v1826 = vsel %vm795, %v1820, 0.0
        %v1827 = vadd.f32 %v1825, %v1826
        %1828 = vadd.xlane.f32.xlu0 %v1827
        %v1829 = vpop.xlane.xlu0 %1828
        %v1830 = vrot.slane %v1829, 4
        %v1831 = vadd.f32 %v1829, %v1830
        %v1832 = vrot.slane %v1831, 2
        %v1833 = vadd.f32 %v1831, %v1832
        %v1834 = vrot.slane %v1833, 1
        %v1835 = vadd.f32 %v1833, %v1834
        %s1836 = vtos %v1835
        %s1837 = smul.f32 %s1836, 0.00390625
        %s1838 = sadd.f32 %s1191, %s1837
        %v1839 = vld [vmem:[%s6] sm:$0xf]
        %v1840 = vld [vmem:[%s7] sm:$0x3]
        %v1842 = vsel %vm1503, %v1839, 0
        %1844 = vmatprep.subr.mxu0 0.0
        %1845 = vmatpush1.msra.mxu0 %v1842
        %1846 = vmatprep.subr.mxu0 0.0
        %1847 = vmatpush1.msra.mxu0 0.0
        %1848 = vmatprep.subr.mxu0 0.0
        %1849 = vmatpush1.msra.mxu0 0.0
        %1850 = vmatprep.subr.mxu0 0.0
        %1851 = vmatpush1.msra.mxu0 0.0
        %1852 = vmatprep.subr.mxu0 0.0
        %1853 = vmatpush1.msra.mxu0 0.0
        %1854 = vmatprep.subr.mxu0 0.0
        %1855 = vmatpush1.msra.mxu0 0.0
        %1856 = vmatprep.subr.mxu0 0.0
        %1857 = vmatpush1.msra.mxu0 0.0
        %1858 = vmatprep.subr.mxu0 0.0
        %1859 = vmatpush1.msra.mxu0 0.0
        %1860 = vmatprep.subr.mxu0 0.0
        %1861 = vmatpush1.msra.mxu0 0.0
        %1862 = vmatprep.subr.mxu0 0.0
        %1863 = vmatpush1.msra.mxu0 0.0
        %1864 = vmatprep.subr.mxu0 0.0
        %1865 = vmatpush1.msra.mxu0 0.0
        %1866 = vmatprep.subr.mxu0 0.0
        %1867 = vmatpush1.msra.mxu0 0.0
        %1868 = vmatprep.subr.mxu0 0.0
        %1869 = vmatpush1.msra.mxu0 0.0
        %1870 = vmatprep.subr.mxu0 0.0
        %1871 = vmatpush1.msra.mxu0 0.0
        %1872 = vmatprep.subr.mxu0 0.0
        %1873 = vmatpush1.msra.mxu0 0.0
        %1874 = vmatprep.subr.mxu0 0.0
        %1875 = vmatpush1.msra.mxu0 0.0
        %1876 = vmatprep.subr.mxu0 0.0
        %1877 = vmatpush1.msra.mxu0 0.0
        %1878 = vmatprep.subr.mxu0 0.0
        %1879 = vmatpush1.msra.mxu0 0.0
        %1880 = vmatprep.subr.mxu0 0.0
        %1881 = vmatpush1.msra.mxu0 0.0
        %1882 = vmatprep.subr.mxu0 0.0
        %1883 = vmatpush1.msra.mxu0 0.0
        %1884 = vmatprep.subr.mxu0 0.0
        %1885 = vmatpush1.msra.mxu0 0.0
        %1886 = vmatprep.subr.mxu0 0.0
        %1887 = vmatpush1.msra.mxu0 0.0
        %1888 = vmatprep.subr.mxu0 0.0
        %1889 = vmatpush1.msra.mxu0 0.0
        %1890 = vmatprep.subr.mxu0 0.0
        %1891 = vmatpush1.msra.mxu0 0.0
        %1892 = vmatprep.subr.mxu0 0.0
        %1893 = vmatpush1.msra.mxu0 0.0
        %1894 = vmatprep.subr.mxu0 0.0
        %1895 = vmatpush1.msra.mxu0 0.0
        %1896 = vmatprep.subr.mxu0 0.0
        %1897 = vmatpush1.msra.mxu0 0.0
        %1898 = vmatprep.subr.mxu0 0.0
        %1899 = vmatpush1.msra.mxu0 0.0
        %1900 = vmatprep.subr.mxu0 0.0
        %1901 = vmatpush1.msra.mxu0 0.0
        %1902 = vmatprep.subr.mxu0 0.0
        %1903 = vmatpush1.msra.mxu0 0.0
        %1904 = vmatprep.subr.mxu0 0.0
        %1905 = vmatpush1.msra.mxu0 0.0
        %1906 = vmatprep.subr.mxu0 0.0
        %1907 = vmatpush1.msra.mxu0 0.0
        %1908 = vmatprep.mubr.f32.mxu0 0.0
        %1909 = vmatmul.mubr.f32.gmra.mrb[0].mxu0 %v1499
        %v1910 = vpop.f32.mrb[0].mxu0
        %v1911 = vadd.f32 0.0, %v1910
        %v1912 = vpop.f32.mrb[0].mxu0
        %1913 = vmatprep.mubr.f32.mxu0 0.0
        %1914 = vmatmul.mubr.f32.gmra.mrb[0].mxu0 %v1501
        %v1915 = vpop.f32.mrb[0].mxu0
        %v1916 = vadd.f32 0.0, %v1915
        %v1917 = vpop.f32.mrb[0].mxu0
        %1918 = vdwg.mxu0
        %v1921 = vcombine.high %v1911, %v1911
        %v1922 = vcombine.high %v1916, %v1916
        %1925 = vxpose.xlu0.b32.start [1/16] %v1911, 128
        %1926 = vxpose.xlu0.b32.cont [2/16] 0.0, 128
        %1927 = vxpose.xlu0.b32.cont [3/16] 0.0, 128
        %1928 = vxpose.xlu0.b32.cont [4/16] 0.0, 128
        %1929 = vxpose.xlu0.b32.cont [5/16] 0.0, 128
        %1930 = vxpose.xlu0.b32.cont [6/16] 0.0, 128
        %1931 = vxpose.xlu0.b32.cont [7/16] 0.0, 128
        %1932 = vxpose.xlu0.b32.cont [8/16] 0.0, 128
        %1933 = vxpose.xlu0.b32.cont [9/16] 0.0, 128
        %1934 = vxpose.xlu0.b32.cont [10/16] 0.0, 128
        %1935 = vxpose.xlu0.b32.cont [11/16] 0.0, 128
        %1936 = vxpose.xlu0.b32.cont [12/16] 0.0, 128
        %1937 = vxpose.xlu0.b32.cont [13/16] 0.0, 128
        %1938 = vxpose.xlu0.b32.cont [14/16] 0.0, 128
        %1939 = vxpose.xlu0.b32.cont [15/16] 0.0, 128
        %1940 = vxpose.xlu0.b32.end [16/16] 0.0, 128
        %v1941 = vpop.trf.xlu0
        %v1942 = vpop.trf.xlu0
        %v1943 = vpop.trf.xlu0
        %v1944 = vpop.trf.xlu0
        %v1945 = vpop.trf.xlu0
        %v1946 = vpop.trf.xlu0
        %v1947 = vpop.trf.xlu0
        %v1948 = vpop.trf.xlu0
        %v1949 = vpop.trf.xlu0
        %v1950 = vpop.trf.xlu0
        %v1951 = vpop.trf.xlu0
        %v1952 = vpop.trf.xlu0
        %v1953 = vpop.trf.xlu0
        %v1954 = vpop.trf.xlu0
        %v1955 = vpop.trf.xlu0
        %v1956 = vpop.trf.xlu0
        %1957 = vxpose.xlu0.b32.start [1/16] %v1921, 128
        %1958 = vxpose.xlu0.b32.cont [2/16] 0.0, 128
        %1959 = vxpose.xlu0.b32.cont [3/16] 0.0, 128
        %1960 = vxpose.xlu0.b32.cont [4/16] 0.0, 128
        %1961 = vxpose.xlu0.b32.cont [5/16] 0.0, 128
        %1962 = vxpose.xlu0.b32.cont [6/16] 0.0, 128
        %1963 = vxpose.xlu0.b32.cont [7/16] 0.0, 128
        %1964 = vxpose.xlu0.b32.cont [8/16] 0.0, 128
        %1965 = vxpose.xlu0.b32.cont [9/16] 0.0, 128
        %1966 = vxpose.xlu0.b32.cont [10/16] 0.0, 128
        %1967 = vxpose.xlu0.b32.cont [11/16] 0.0, 128
        %1968 = vxpose.xlu0.b32.cont [12/16] 0.0, 128
        %1969 = vxpose.xlu0.b32.cont [13/16] 0.0, 128
        %1970 = vxpose.xlu0.b32.cont [14/16] 0.0, 128
        %1971 = vxpose.xlu0.b32.cont [15/16] 0.0, 128
        %1972 = vxpose.xlu0.b32.end [16/16] 0.0, 128
        %v1973 = vpop.trf.xlu0
        %v1974 = vpop.trf.xlu0
        %v1975 = vpop.trf.xlu0
        %v1976 = vpop.trf.xlu0
        %v1977 = vpop.trf.xlu0
        %v1978 = vpop.trf.xlu0
        %v1979 = vpop.trf.xlu0
        %v1980 = vpop.trf.xlu0
        %v1981 = vpop.trf.xlu0
        %v1982 = vpop.trf.xlu0
        %v1983 = vpop.trf.xlu0
        %v1984 = vpop.trf.xlu0
        %v1985 = vpop.trf.xlu0
        %v1986 = vpop.trf.xlu0
        %v1987 = vpop.trf.xlu0
        %v1988 = vpop.trf.xlu0
        %1989 = vxpose.xlu0.b32.start [1/16] %v1916, 128
        %1990 = vxpose.xlu0.b32.cont [2/16] 0.0, 128
        %1991 = vxpose.xlu0.b32.cont [3/16] 0.0, 128
        %1992 = vxpose.xlu0.b32.cont [4/16] 0.0, 128
        %1993 = vxpose.xlu0.b32.cont [5/16] 0.0, 128
        %1994 = vxpose.xlu0.b32.cont [6/16] 0.0, 128
        %1995 = vxpose.xlu0.b32.cont [7/16] 0.0, 128
        %1996 = vxpose.xlu0.b32.cont [8/16] 0.0, 128
        %1997 = vxpose.xlu0.b32.cont [9/16] 0.0, 128
        %1998 = vxpose.xlu0.b32.cont [10/16] 0.0, 128
        %1999 = vxpose.xlu0.b32.cont [11/16] 0.0, 128
        %2000 = vxpose.xlu0.b32.cont [12/16] 0.0, 128
        %2001 = vxpose.xlu0.b32.cont [13/16] 0.0, 128
        %2002 = vxpose.xlu0.b32.cont [14/16] 0.0, 128
        %2003 = vxpose.xlu0.b32.cont [15/16] 0.0, 128
        %2004 = vxpose.xlu0.b32.end [16/16] 0.0, 128
        %v2005 = vpop.trf.xlu0
        %v2006 = vpop.trf.xlu0
        %v2007 = vpop.trf.xlu0
        %v2008 = vpop.trf.xlu0
        %v2009 = vpop.trf.xlu0
        %v2010 = vpop.trf.xlu0
        %v2011 = vpop.trf.xlu0
        %v2012 = vpop.trf.xlu0
        %v2013 = vpop.trf.xlu0
        %v2014 = vpop.trf.xlu0
        %v2015 = vpop.trf.xlu0
        %v2016 = vpop.trf.xlu0
        %v2017 = vpop.trf.xlu0
        %v2018 = vpop.trf.xlu0
        %v2019 = vpop.trf.xlu0
        %v2020 = vpop.trf.xlu0
        %2021 = vxpose.xlu0.b32.start [1/16] %v1922, 128
        %2022 = vxpose.xlu0.b32.cont [2/16] 0.0, 128
        %2023 = vxpose.xlu0.b32.cont [3/16] 0.0, 128
        %2024 = vxpose.xlu0.b32.cont [4/16] 0.0, 128
        %2025 = vxpose.xlu0.b32.cont [5/16] 0.0, 128
        %2026 = vxpose.xlu0.b32.cont [6/16] 0.0, 128
        %2027 = vxpose.xlu0.b32.cont [7/16] 0.0, 128
        %2028 = vxpose.xlu0.b32.cont [8/16] 0.0, 128
        %2029 = vxpose.xlu0.b32.cont [9/16] 0.0, 128
        %2030 = vxpose.xlu0.b32.cont [10/16] 0.0, 128
        %2031 = vxpose.xlu0.b32.cont [11/16] 0.0, 128
        %2032 = vxpose.xlu0.b32.cont [12/16] 0.0, 128
        %2033 = vxpose.xlu0.b32.cont [13/16] 0.0, 128
        %2034 = vxpose.xlu0.b32.cont [14/16] 0.0, 128
        %2035 = vxpose.xlu0.b32.cont [15/16] 0.0, 128
        %2036 = vxpose.xlu0.b32.end [16/16] 0.0, 128
        %v2037 = vpop.trf.xlu0
        %v2038 = vpop.trf.xlu0
        %v2039 = vpop.trf.xlu0
        %v2040 = vpop.trf.xlu0
        %v2041 = vpop.trf.xlu0
        %v2042 = vpop.trf.xlu0
        %v2043 = vpop.trf.xlu0
        %v2044 = vpop.trf.xlu0
        %v2045 = vpop.trf.xlu0
        %v2046 = vpop.trf.xlu0
        %v2047 = vpop.trf.xlu0
        %v2048 = vpop.trf.xlu0
        %v2049 = vpop.trf.xlu0
        %v2050 = vpop.trf.xlu0
        %v2051 = vpop.trf.xlu0
        %v2052 = vpop.trf.xlu0
        %v2057 = vcombine.low %v1941, %v1973
        %v2058 = vcombine.low %v2005, %v2037
        %v2060 = vunpack.c.l.s4 1983009808
        %v2061 = vunpack.c.0.s8 %v2060
        %v2062 = vlaneseq
        %v2063 = vshrl.u32 %v2062, 7
        %v2064 = vsub.s32 %v2061, %v2063
        %v2065 = vrot.slane %v2057, %v2064
        %v2067 = vunpack.c.l.s4 1983009808
        %v2068 = vunpack.c.0.s8 %v2067
        %v2069 = vlaneseq
        %v2070 = vshrl.u32 %v2069, 7
        %v2071 = vsub.s32 %v2068, %v2070
        %v2072 = vrot.slane %v2058, %v2071
        %v2073 = vcombine.low %v2065, %v2072
        %v2074 = vsel %vm1498, %v2073, 0
        %2076 = vmatprep.subr.mxu0 0.0
        %2077 = vmatpush1.msra.mxu0 %v1842
        %2078 = vmatprep.subr.mxu0 0.0
        %2079 = vmatpush1.msra.mxu0 0.0
        %2080 = vmatprep.subr.mxu0 0.0
        %2081 = vmatpush1.msra.mxu0 0.0
        %2082 = vmatprep.subr.mxu0 0.0
        %2083 = vmatpush1.msra.mxu0 0.0
        %2084 = vmatprep.subr.mxu0 0.0
        %2085 = vmatpush1.msra.mxu0 0.0
        %2086 = vmatprep.subr.mxu0 0.0
        %2087 = vmatpush1.msra.mxu0 0.0
        %2088 = vmatprep.subr.mxu0 0.0
        %2089 = vmatpush1.msra.mxu0 0.0
        %2090 = vmatprep.subr.mxu0 0.0
        %2091 = vmatpush1.msra.mxu0 0.0
        %2092 = vmatprep.subr.mxu0 0.0
        %2093 = vmatpush1.msra.mxu0 0.0
        %2094 = vmatprep.subr.mxu0 0.0
        %2095 = vmatpush1.msra.mxu0 0.0
        %2096 = vmatprep.subr.mxu0 0.0
        %2097 = vmatpush1.msra.mxu0 0.0
        %2098 = vmatprep.subr.mxu0 0.0
        %2099 = vmatpush1.msra.mxu0 0.0
        %2100 = vmatprep.subr.mxu0 0.0
        %2101 = vmatpush1.msra.mxu0 0.0
        %2102 = vmatprep.subr.mxu0 0.0
        %2103 = vmatpush1.msra.mxu0 0.0
        %2104 = vmatprep.subr.mxu0 0.0
        %2105 = vmatpush1.msra.mxu0 0.0
        %2106 = vmatprep.subr.mxu0 0.0
        %2107 = vmatpush1.msra.mxu0 0.0
        %2108 = vmatprep.subr.mxu0 0.0
        %2109 = vmatpush1.msra.mxu0 0.0
        %2110 = vmatprep.subr.mxu0 0.0
        %2111 = vmatpush1.msra.mxu0 0.0
        %2112 = vmatprep.subr.mxu0 0.0
        %2113 = vmatpush1.msra.mxu0 0.0
        %2114 = vmatprep.subr.mxu0 0.0
        %2115 = vmatpush1.msra.mxu0 0.0
        %2116 = vmatprep.subr.mxu0 0.0
        %2117 = vmatpush1.msra.mxu0 0.0
        %2118 = vmatprep.subr.mxu0 0.0
        %2119 = vmatpush1.msra.mxu0 0.0
        %2120 = vmatprep.subr.mxu0 0.0
        %2121 = vmatpush1.msra.mxu0 0.0
        %2122 = vmatprep.subr.mxu0 0.0
        %2123 = vmatpush1.msra.mxu0 0.0
        %2124 = vmatprep.subr.mxu0 0.0
        %2125 = vmatpush1.msra.mxu0 0.0
        %2126 = vmatprep.subr.mxu0 0.0
        %2127 = vmatpush1.msra.mxu0 0.0
        %2128 = vmatprep.subr.mxu0 0.0
        %2129 = vmatpush1.msra.mxu0 0.0
        %2130 = vmatprep.subr.mxu0 0.0
        %2131 = vmatpush1.msra.mxu0 0.0
        %2132 = vmatprep.subr.mxu0 0.0
        %2133 = vmatpush1.msra.mxu0 0.0
        %2134 = vmatprep.subr.mxu0 0.0
        %2135 = vmatpush1.msra.mxu0 0.0
        %2136 = vmatprep.subr.mxu0 0.0
        %2137 = vmatpush1.msra.mxu0 0.0
        %2138 = vmatprep.subr.mxu0 0.0
        %2139 = vmatpush1.msra.mxu0 0.0
        %2140 = vmatprep.mubr.f32.mxu0 0.0
        %2141 = vmatmul.mubr.f32.gmra.mrb[0].mxu0 %v2074
        %v2142 = vpop.f32.mrb[0].mxu0
        %v2143 = vadd.f32 0.0, %v2142
        %v2144 = vpop.f32.mrb[0].mxu0
        %2145 = vdwg.mxu0
        %v2147 = vcombine.high %v2143, %v2143
        %v2149 = vunpack.c.l.s4 1983009808
        %v2150 = vunpack.c.0.s8 %v2149
        %v2151 = vlaneseq
        %v2152 = vshrl.u32 %v2151, 7
        %v2153 = vsub.s32 %v2150, %v2152
        %v2154 = vrot.slane %v2143, %v2153
        %v2156 = vunpack.c.l.s4 1983009808
        %v2157 = vunpack.c.0.s8 %v2156
        %v2158 = vlaneseq
        %v2159 = vshrl.u32 %v2158, 7
        %v2160 = vsub.s32 %v2157, %v2159
        %v2161 = vrot.slane %v2147, %v2160
        %v2162 = vcombine.high %v2154, %v2154
        %v2163 = vcombine.high %v2161, %v2161
        %vm2168 = vcmask 15360
        %v2169 = vsel %vm2168, %v2143, 0
        %vm2171 = vcmask 1041408
        %v2173 = vsel %vm2171, %v1840, 0
        %2175 = vmatprep.subr.mxu0 0.0
        %2176 = vmatpush1.msra.mxu0 %v2173
        %2177 = vmatprep.subr.mxu0 0.0
        %2178 = vmatpush1.msra.mxu0 0.0
        %2179 = vmatprep.subr.mxu0 0.0
        %2180 = vmatpush1.msra.mxu0 0.0
        %2181 = vmatprep.subr.mxu0 0.0
        %2182 = vmatpush1.msra.mxu0 0.0
        %2183 = vmatprep.subr.mxu0 0.0
        %2184 = vmatpush1.msra.mxu0 0.0
        %2185 = vmatprep.subr.mxu0 0.0
        %2186 = vmatpush1.msra.mxu0 0.0
        %2187 = vmatprep.subr.mxu0 0.0
        %2188 = vmatpush1.msra.mxu0 0.0
        %2189 = vmatprep.subr.mxu0 0.0
        %2190 = vmatpush1.msra.mxu0 0.0
        %2191 = vmatprep.subr.mxu0 0.0
        %2192 = vmatpush1.msra.mxu0 0.0
        %2193 = vmatprep.subr.mxu0 0.0
        %2194 = vmatpush1.msra.mxu0 0.0
        %2195 = vmatprep.subr.mxu0 0.0
        %2196 = vmatpush1.msra.mxu0 0.0
        %2197 = vmatprep.subr.mxu0 0.0
        %2198 = vmatpush1.msra.mxu0 0.0
        %2199 = vmatprep.subr.mxu0 0.0
        %2200 = vmatpush1.msra.mxu0 0.0
        %2201 = vmatprep.subr.mxu0 0.0
        %2202 = vmatpush1.msra.mxu0 0.0
        %2203 = vmatprep.subr.mxu0 0.0
        %2204 = vmatpush1.msra.mxu0 0.0
        %2205 = vmatprep.subr.mxu0 0.0
        %2206 = vmatpush1.msra.mxu0 0.0
        %2207 = vmatprep.subr.mxu0 0.0
        %2208 = vmatpush1.msra.mxu0 0.0
        %2209 = vmatprep.subr.mxu0 0.0
        %2210 = vmatpush1.msra.mxu0 0.0
        %2211 = vmatprep.subr.mxu0 0.0
        %2212 = vmatpush1.msra.mxu0 0.0
        %2213 = vmatprep.subr.mxu0 0.0
        %2214 = vmatpush1.msra.mxu0 0.0
        %2215 = vmatprep.subr.mxu0 0.0
        %2216 = vmatpush1.msra.mxu0 0.0
        %2217 = vmatprep.subr.mxu0 0.0
        %2218 = vmatpush1.msra.mxu0 0.0
        %2219 = vmatprep.subr.mxu0 0.0
        %2220 = vmatpush1.msra.mxu0 0.0
        %2221 = vmatprep.subr.mxu0 0.0
        %2222 = vmatpush1.msra.mxu0 0.0
        %2223 = vmatprep.subr.mxu0 0.0
        %2224 = vmatpush1.msra.mxu0 0.0
        %2225 = vmatprep.subr.mxu0 0.0
        %2226 = vmatpush1.msra.mxu0 0.0
        %2227 = vmatprep.subr.mxu0 0.0
        %2228 = vmatpush1.msra.mxu0 0.0
        %2229 = vmatprep.subr.mxu0 0.0
        %2230 = vmatpush1.msra.mxu0 0.0
        %2231 = vmatprep.subr.mxu0 0.0
        %2232 = vmatpush1.msra.mxu0 0.0
        %2233 = vmatprep.subr.mxu0 0.0
        %2234 = vmatpush1.msra.mxu0 0.0
        %2235 = vmatprep.subr.mxu0 0.0
        %2236 = vmatpush1.msra.mxu0 0.0
        %2237 = vmatprep.subr.mxu0 0.0
        %2238 = vmatpush1.msra.mxu0 0.0
        %2239 = vmatprep.mubr.f32.mxu0 0.0
        %2240 = vmatmul.mubr.f32.gmra.mrb[0].mxu0 %v2169
        %v2241 = vpop.f32.mrb[0].mxu0
        %v2242 = vadd.f32 0.0, %v2241
        %v2243 = vpop.f32.mrb[0].mxu0
        %2244 = vdwg.mxu0
        %v2246 = vcombine.high %v2242, %v2242
        %v2248 = vunpack.c.l.s4 1983009808
        %v2249 = vunpack.c.0.s8 %v2248
        %v2250 = vlaneseq
        %v2251 = vshrl.u32 %v2250, 7
        %v2252 = vsub.s32 %v2249, %v2251
        %v2253 = vrot.slane %v2242, %v2252
        %v2255 = vunpack.c.l.s4 1983009808
        %v2256 = vunpack.c.0.s8 %v2255
        %v2257 = vlaneseq
        %v2258 = vshrl.u32 %v2257, 7
        %v2259 = vsub.s32 %v2256, %v2258
        %v2260 = vrot.slane %v2246, %v2259
        %v2261 = vcombine.high %v2253, %v2253
        %v2262 = vcombine.high %v2260, %v2260
        %2267 = vxpose.xlu0.b32.start [1/16] %v2253, 128
        %2268 = vxpose.xlu0.b32.cont [2/16] 0.0, 128
        %2269 = vxpose.xlu0.b32.cont [3/16] 0.0, 128
        %2270 = vxpose.xlu0.b32.cont [4/16] 0.0, 128
        %2271 = vxpose.xlu0.b32.cont [5/16] 0.0, 128
        %2272 = vxpose.xlu0.b32.cont [6/16] 0.0, 128
        %2273 = vxpose.xlu0.b32.cont [7/16] 0.0, 128
        %2274 = vxpose.xlu0.b32.cont [8/16] 0.0, 128
        %2275 = vxpose.xlu0.b32.cont [9/16] 0.0, 128
        %2276 = vxpose.xlu0.b32.cont [10/16] 0.0, 128
        %2277 = vxpose.xlu0.b32.cont [11/16] 0.0, 128
        %2278 = vxpose.xlu0.b32.cont [12/16] 0.0, 128
        %2279 = vxpose.xlu0.b32.cont [13/16] 0.0, 128
        %2280 = vxpose.xlu0.b32.cont [14/16] 0.0, 128
        %2281 = vxpose.xlu0.b32.cont [15/16] 0.0, 128
        %2282 = vxpose.xlu0.b32.end [16/16] 0.0, 128
        %v2283 = vpop.trf.xlu0
        %v2284 = vpop.trf.xlu0
        %v2285 = vpop.trf.xlu0
        %v2286 = vpop.trf.xlu0
        %v2287 = vpop.trf.xlu0
        %v2288 = vpop.trf.xlu0
        %v2289 = vpop.trf.xlu0
        %v2290 = vpop.trf.xlu0
        %v2291 = vpop.trf.xlu0
        %v2292 = vpop.trf.xlu0
        %v2293 = vpop.trf.xlu0
        %v2294 = vpop.trf.xlu0
        %v2295 = vpop.trf.xlu0
        %v2296 = vpop.trf.xlu0
        %v2297 = vpop.trf.xlu0
        %v2298 = vpop.trf.xlu0
        %2299 = vxpose.xlu0.b32.start [1/16] %v2261, 128
        %2300 = vxpose.xlu0.b32.cont [2/16] 0.0, 128
        %2301 = vxpose.xlu0.b32.cont [3/16] 0.0, 128
        %2302 = vxpose.xlu0.b32.cont [4/16] 0.0, 128
        %2303 = vxpose.xlu0.b32.cont [5/16] 0.0, 128
        %2304 = vxpose.xlu0.b32.cont [6/16] 0.0, 128
        %2305 = vxpose.xlu0.b32.cont [7/16] 0.0, 128
        %2306 = vxpose.xlu0.b32.cont [8/16] 0.0, 128
        %2307 = vxpose.xlu0.b32.cont [9/16] 0.0, 128
        %2308 = vxpose.xlu0.b32.cont [10/16] 0.0, 128
        %2309 = vxpose.xlu0.b32.cont [11/16] 0.0, 128
        %2310 = vxpose.xlu0.b32.cont [12/16] 0.0, 128
        %2311 = vxpose.xlu0.b32.cont [13/16] 0.0, 128
        %2312 = vxpose.xlu0.b32.cont [14/16] 0.0, 128
        %2313 = vxpose.xlu0.b32.cont [15/16] 0.0, 128
        %2314 = vxpose.xlu0.b32.end [16/16] 0.0, 128
        %v2315 = vpop.trf.xlu0
        %v2316 = vpop.trf.xlu0
        %v2317 = vpop.trf.xlu0
        %v2318 = vpop.trf.xlu0
        %v2319 = vpop.trf.xlu0
        %v2320 = vpop.trf.xlu0
        %v2321 = vpop.trf.xlu0
        %v2322 = vpop.trf.xlu0
        %v2323 = vpop.trf.xlu0
        %v2324 = vpop.trf.xlu0
        %v2325 = vpop.trf.xlu0
        %v2326 = vpop.trf.xlu0
        %v2327 = vpop.trf.xlu0
        %v2328 = vpop.trf.xlu0
        %v2329 = vpop.trf.xlu0
        %v2330 = vpop.trf.xlu0
        %2331 = vxpose.xlu0.b32.start [1/16] %v2260, 128
        %2332 = vxpose.xlu0.b32.cont [2/16] 0.0, 128
        %2333 = vxpose.xlu0.b32.cont [3/16] 0.0, 128
        %2334 = vxpose.xlu0.b32.cont [4/16] 0.0, 128
        %2335 = vxpose.xlu0.b32.cont [5/16] 0.0, 128
        %2336 = vxpose.xlu0.b32.cont [6/16] 0.0, 128
        %2337 = vxpose.xlu0.b32.cont [7/16] 0.0, 128
        %2338 = vxpose.xlu0.b32.cont [8/16] 0.0, 128
        %2339 = vxpose.xlu0.b32.cont [9/16] 0.0, 128
        %2340 = vxpose.xlu0.b32.cont [10/16] 0.0, 128
        %2341 = vxpose.xlu0.b32.cont [11/16] 0.0, 128
        %2342 = vxpose.xlu0.b32.cont [12/16] 0.0, 128
        %2343 = vxpose.xlu0.b32.cont [13/16] 0.0, 128
        %2344 = vxpose.xlu0.b32.cont [14/16] 0.0, 128
        %2345 = vxpose.xlu0.b32.cont [15/16] 0.0, 128
        %2346 = vxpose.xlu0.b32.end [16/16] 0.0, 128
        %v2347 = vpop.trf.xlu0
        %v2348 = vpop.trf.xlu0
        %v2349 = vpop.trf.xlu0
        %v2350 = vpop.trf.xlu0
        %v2351 = vpop.trf.xlu0
        %v2352 = vpop.trf.xlu0
        %v2353 = vpop.trf.xlu0
        %v2354 = vpop.trf.xlu0
        %v2355 = vpop.trf.xlu0
        %v2356 = vpop.trf.xlu0
        %v2357 = vpop.trf.xlu0
        %v2358 = vpop.trf.xlu0
        %v2359 = vpop.trf.xlu0
        %v2360 = vpop.trf.xlu0
        %v2361 = vpop.trf.xlu0
        %v2362 = vpop.trf.xlu0
        %2363 = vxpose.xlu0.b32.start [1/16] %v2262, 128
        %2364 = vxpose.xlu0.b32.cont [2/16] 0.0, 128
        %2365 = vxpose.xlu0.b32.cont [3/16] 0.0, 128
        %2366 = vxpose.xlu0.b32.cont [4/16] 0.0, 128
        %2367 = vxpose.xlu0.b32.cont [5/16] 0.0, 128
        %2368 = vxpose.xlu0.b32.cont [6/16] 0.0, 128
        %2369 = vxpose.xlu0.b32.cont [7/16] 0.0, 128
        %2370 = vxpose.xlu0.b32.cont [8/16] 0.0, 128
        %2371 = vxpose.xlu0.b32.cont [9/16] 0.0, 128
        %2372 = vxpose.xlu0.b32.cont [10/16] 0.0, 128
        %2373 = vxpose.xlu0.b32.cont [11/16] 0.0, 128
        %2374 = vxpose.xlu0.b32.cont [12/16] 0.0, 128
        %2375 = vxpose.xlu0.b32.cont [13/16] 0.0, 128
        %2376 = vxpose.xlu0.b32.cont [14/16] 0.0, 128
        %2377 = vxpose.xlu0.b32.cont [15/16] 0.0, 128
        %2378 = vxpose.xlu0.b32.end [16/16] 0.0, 128
        %v2379 = vpop.trf.xlu0
        %v2380 = vpop.trf.xlu0
        %v2381 = vpop.trf.xlu0
        %v2382 = vpop.trf.xlu0
        %v2383 = vpop.trf.xlu0
        %v2384 = vpop.trf.xlu0
        %v2385 = vpop.trf.xlu0
        %v2386 = vpop.trf.xlu0
        %v2387 = vpop.trf.xlu0
        %v2388 = vpop.trf.xlu0
        %v2389 = vpop.trf.xlu0
        %v2390 = vpop.trf.xlu0
        %v2391 = vpop.trf.xlu0
        %v2392 = vpop.trf.xlu0
        %v2393 = vpop.trf.xlu0
        %v2394 = vpop.trf.xlu0
        %v2399 = vcombine.low %v2283, %v2315
        %v2400 = vcombine.low %v2347, %v2379
        %v2401 = vsel %vm2168, %v2399, 0
        %v2403 = vsel %vm2168, %v2400, 0
        %2405 = vmatprep.subr.mxu0 0.0
        %2406 = vmatpush1.msra.mxu0 %v2173
        %2407 = vmatprep.subr.mxu0 0.0
        %2408 = vmatpush1.msra.mxu0 0.0
        %2409 = vmatprep.subr.mxu0 0.0
        %2410 = vmatpush1.msra.mxu0 0.0
        %2411 = vmatprep.subr.mxu0 0.0
        %2412 = vmatpush1.msra.mxu0 0.0
        %2413 = vmatprep.subr.mxu0 0.0
        %2414 = vmatpush1.msra.mxu0 0.0
        %2415 = vmatprep.subr.mxu0 0.0
        %2416 = vmatpush1.msra.mxu0 0.0
        %2417 = vmatprep.subr.mxu0 0.0
        %2418 = vmatpush1.msra.mxu0 0.0
        %2419 = vmatprep.subr.mxu0 0.0
        %2420 = vmatpush1.msra.mxu0 0.0
        %2421 = vmatprep.subr.mxu0 0.0
        %2422 = vmatpush1.msra.mxu0 0.0
        %2423 = vmatprep.subr.mxu0 0.0
        %2424 = vmatpush1.msra.mxu0 0.0
        %2425 = vmatprep.subr.mxu0 0.0
        %2426 = vmatpush1.msra.mxu0 0.0
        %2427 = vmatprep.subr.mxu0 0.0
        %2428 = vmatpush1.msra.mxu0 0.0
        %2429 = vmatprep.subr.mxu0 0.0
        %2430 = vmatpush1.msra.mxu0 0.0
        %2431 = vmatprep.subr.mxu0 0.0
        %2432 = vmatpush1.msra.mxu0 0.0
        %2433 = vmatprep.subr.mxu0 0.0
        %2434 = vmatpush1.msra.mxu0 0.0
        %2435 = vmatprep.subr.mxu0 0.0
        %2436 = vmatpush1.msra.mxu0 0.0
        %2437 = vmatprep.subr.mxu0 0.0
        %2438 = vmatpush1.msra.mxu0 0.0
        %2439 = vmatprep.subr.mxu0 0.0
        %2440 = vmatpush1.msra.mxu0 0.0
        %2441 = vmatprep.subr.mxu0 0.0
        %2442 = vmatpush1.msra.mxu0 0.0
        %2443 = vmatprep.subr.mxu0 0.0
        %2444 = vmatpush1.msra.mxu0 0.0
        %2445 = vmatprep.subr.mxu0 0.0
        %2446 = vmatpush1.msra.mxu0 0.0
        %2447 = vmatprep.subr.mxu0 0.0
        %2448 = vmatpush1.msra.mxu0 0.0
        %2449 = vmatprep.subr.mxu0 0.0
        %2450 = vmatpush1.msra.mxu0 0.0
        %2451 = vmatprep.subr.mxu0 0.0
        %2452 = vmatpush1.msra.mxu0 0.0
        %2453 = vmatprep.subr.mxu0 0.0
        %2454 = vmatpush1.msra.mxu0 0.0
        %2455 = vmatprep.subr.mxu0 0.0
        %2456 = vmatpush1.msra.mxu0 0.0
        %2457 = vmatprep.subr.mxu0 0.0
        %2458 = vmatpush1.msra.mxu0 0.0
        %2459 = vmatprep.subr.mxu0 0.0
        %2460 = vmatpush1.msra.mxu0 0.0
        %2461 = vmatprep.subr.mxu0 0.0
        %2462 = vmatpush1.msra.mxu0 0.0
        %2463 = vmatprep.subr.mxu0 0.0
        %2464 = vmatpush1.msra.mxu0 0.0
        %2465 = vmatprep.subr.mxu0 0.0
        %2466 = vmatpush1.msra.mxu0 0.0
        %2467 = vmatprep.subr.mxu0 0.0
        %2468 = vmatpush1.msra.mxu0 0.0
        %2469 = vmatprep.mubr.f32.mxu0 0.0
        %2470 = vmatmul.mubr.f32.gmra.mrb[0].mxu0 %v2401
        %v2471 = vpop.f32.mrb[0].mxu0
        %v2472 = vadd.f32 0.0, %v2471
        %v2473 = vpop.f32.mrb[0].mxu0
        %2474 = vmatprep.mubr.f32.mxu0 0.0
        %2475 = vmatmul.mubr.f32.gmra.mrb[0].mxu0 %v2403
        %v2476 = vpop.f32.mrb[0].mxu0
        %v2477 = vadd.f32 0.0, %v2476
        %v2478 = vpop.f32.mrb[0].mxu0
        %2479 = vdwg.mxu0
        %v2482 = vcombine.high %v2472, %v2472
        %v2483 = vcombine.high %v2477, %v2477
        %v2486 = vsub.f32 %v1484, %v2472
        %v2487 = vsub.f32 %v1494, %v2482
        %v2488 = vsub.f32 %v1489, %v2477
        %v2489 = vsub.f32 %v1495, %v2483
        %v2490 = vmul.f32 %v2486, %v2486
        %v2491 = vmul.f32 %v2487, %v2487
        %v2492 = vmul.f32 %v2488, %v2488
        %v2493 = vmul.f32 %v2489, %v2489
        %vm2494 = vcmask 27648
        %v2495 = vsel %vm2494, %v2490, 0.0
        %v2496 = vsel %vm2494, %v2491, 0.0
        %v2497 = vadd.f32 %v2495, %v2496
        %v2498 = vsel %vm2494, %v2492, 0.0
        %v2499 = vadd.f32 %v2497, %v2498
        %v2500 = vsel %vm2494, %v2493, 0.0
        %v2501 = vadd.f32 %v2499, %v2500
        %2502 = vadd.xlane.f32.xlu0 %v2501
        %v2503 = vpop.xlane.xlu0 %2502
        %v2504 = vrot.slane %v2503, 4
        %v2505 = vadd.f32 %v2503, %v2504
        %v2506 = vrot.slane %v2505, 2
        %v2507 = vadd.f32 %v2505, %v2506
        %v2508 = vrot.slane %v2507, 1
        %v2509 = vadd.f32 %v2507, %v2508
        %s2510 = vtos %v2509
        %s2511 = smul.f32 %s2510, 0.015625
        %s2512 = sadd.f32 %s1838, %s2511
        %v2513 = vmul.f32 %v2154, %v2154
        %v2514 = vmul.f32 %v2162, %v2162
        %v2515 = vmul.f32 %v2161, %v2161
        %v2516 = vmul.f32 %v2163, %v2163
        %vm2517 = vcmask 9216
        %v2518 = vsel %vm2517, %v2513, 0.0
        %v2519 = vsel %vm2517, %v2514, 0.0
        %v2520 = vadd.f32 %v2518, %v2519
        %v2521 = vsel %vm2517, %v2515, 0.0
        %v2522 = vadd.f32 %v2520, %v2521
        %v2523 = vsel %vm2517, %v2516, 0.0
        %v2524 = vadd.f32 %v2522, %v2523
        %2525 = vadd.xlane.f32.xlu0 %v2524
        %v2526 = vpop.xlane.xlu0 %2525
        %v2527 = vrot.slane %v2526, 4
        %v2528 = vadd.f32 %v2526, %v2527
        %v2529 = vrot.slane %v2528, 2
        %v2530 = vadd.f32 %v2528, %v2529
        %v2531 = vrot.slane %v2530, 1
        %v2532 = vadd.f32 %v2530, %v2531
        %s2533 = vtos %v2532
        %s2534 = smul.f32 %s2533, 0.0625
        %s2535 = sadd.f32 %s2512, %s2534
        %v2536 = vstv %s2535
        %2537 = vst [vmem:[%s379] sm:$0x1] %v2536
        %p2538 = scmp.lt.s32.totalorder %s25, 1
        %s2539 = scalar_select %p2538, %s25, 1
        %s2540 = scalar_lea.vmem %s8, %s2539
        // Predicated region
        $region65: #{_lambda_.1} parent=51 // pred_check
          %p2541 = pneg %p221
        $region66: #{_lambda_.1} parent=51 // pred_check_branch
          %2543 = sbr.rel (%p2541) target = $region68
        $region67: #{_lambda_.1} parent=51 // pred_region
          _
        $region68: #{_lambda_.1} parent=51 // pred_fallthru
          _
      $region52: #{_lambda_.1} parent=5 // pred_fallthru
        _
      %p2544 = scmp.le.s32.totalorder 2, %s20
      // Predicated region
      $region69: #{_lambda_.1} parent=5 // pred_check
        %p2545 = pneg %p2544
      $region70: #{_lambda_.1} parent=5 // pred_check_branch
        %2547 = sbr.rel (%p2545) target = $region72
      $region71: #{_lambda_.1} parent=5 // pred_region
        %s2548 = ssub.s32 %s20, 2
        // Predicated region
        $region73: #{_lambda_.1} parent=71 // pred_check
          %p2549 = pneg %p227
        $region74: #{_lambda_.1} parent=71 // pred_check_branch
          %2551 = sbr.rel (%p2549) target = $region76
        $region75: #{_lambda_.1} parent=71 // pred_region
          %p2552 = scmp.lt.s32.totalorder %s26, 1
          %s2553 = scalar_select %p2552, %s26, 1
          %s2554 = scalar_lea.vmem %s8, %s2553
        $region76: #{_lambda_.1} parent=71 // pred_fallthru
          _
      $region72: #{_lambda_.1} parent=5 // pred_fallthru
        _
    $region6: #{_lambda_.1} parent=1 // loop_footer
      %s24 = sadd.s32 1, %s20
    $region7: #{_lambda_.1} parent=1 // loop_footer_branch
      %19 = sbr.rel target = $region3
    $region8: #{_lambda_.1} parent=1 // loop_exit
      _
    %2555 = vsyncpa [#allocation3], 1
    %s2556 = scalar_lea.sflag [#allocation3], 1
    %2557 = vsyncpa %s2556, 1
    %2558 = vsyncpa [#allocation5], 1
    %s2559 = scalar_lea.sflag [#allocation5], 1
    %2560 = vsyncpa %s2559, 1

</llo_original>
